<compile_context>
chip_gen: v7x
topology: tpu7x:2x2x1
jax: 0.10.0
libtpu: 0.0.40
codegen_flags: <defaults>
</compile_context>

<pallas_src>
import jax
import jax.numpy as jnp
from jax import lax
from jax.experimental import pallas as pl
from jax.experimental.pallas import tpu as pltpu

K = 5       # conv kernel size
PAD = 2     # conv padding
EPS = 1e-5  # InstanceNorm1d default eps


def _load_padded(pad_ref, x, T, zero_edges=True):
    """Write x into pad_ref[PAD:PAD+T]; keep the PAD edge rows at zero."""
    C = pad_ref.shape[1]
    if zero_edges:
        edge = jnp.zeros((PAD, C), pad_ref.dtype)
        pad_ref[0:PAD, :] = edge
        pad_ref[PAD + T:PAD + T + PAD, :] = edge
    pad_ref[PAD:PAD + T, :] = x.astype(pad_ref.dtype)


def _conv_accum(pad_ref, w_ref, acc_ref, T):
    """conv1d(k=5, pad=2): 5 shifted bf16 MXU matmuls accumulated in f32 scratch."""
    acc_ref[...] = jnp.dot(pad_ref[0:T, :].astype(jnp.bfloat16), w_ref[0],
                           preferred_element_type=jnp.float32)
    for k in range(1, K):  # static unrolled taps
        acc_ref[...] += jnp.dot(pad_ref[k:k + T, :].astype(jnp.bfloat16), w_ref[k],
                                preferred_element_type=jnp.float32)


def _norm_relu(h, T):
    """InstanceNorm1d (affine=False) fused with ReLU; single stats sweep, f32."""
    inv_t = 1.0 / T
    mean = jnp.sum(h, axis=0, keepdims=True) * inv_t
    ex2 = jnp.sum(h * h, axis=0, keepdims=True) * inv_t
    var = ex2 - mean * mean  # biased variance, matches InstanceNorm1d
    return jnp.maximum((h - mean) * lax.rsqrt(var + EPS), 0.0)


def pitch_kernel(x_ref, w1_ref, w2_ref, w3_ref, b3_ref, out_ref,
                 pad1, pad2, acc):
    T = x_ref.shape[1]

    # conv1 -> InstanceNorm -> ReLU  (conv bias cancelled exactly by the norm)
    _load_padded(pad1, x_ref[0], T)
    _conv_accum(pad1, w1_ref, acc, T)
    h1 = _norm_relu(acc[...], T)

    # conv2 -> InstanceNorm -> ReLU
    _load_padded(pad2, h1, T)
    _conv_accum(pad2, w2_ref, acc, T)
    h2 = _norm_relu(acc[...], T)

    # conv3 (Cout=2) + bias; output is tiny so SSA accumulation is fine.
    _load_padded(pad2, h2, T, zero_edges=False)  # edges already zero this call
    y = jnp.dot(pad2[0:T, :].astype(jnp.bfloat16), w3_ref[0],
                preferred_element_type=jnp.float32)
    for k in range(1, K):
        y = y + jnp.dot(pad2[k:k + T, :].astype(jnp.bfloat16), w3_ref[k],
                        preferred_element_type=jnp.float32)
    y = y + b3_ref[...]

    # channel 0 = pitch (identity), channel 1 = voiced (sigmoid only on col 1).
    out_ref[0, :, 0:1] = y[:, 0:1]
    out_ref[0, :, 1:2] = jax.nn.sigmoid(y[:, 1:2])


def pitch_predictor(x, params):
    """x: (B, T, Cin) float32. Returns (pitch (B, T), voiced (B, T))."""
    w1, b1, w2, b2, w3, b3 = params
    del b1, b2  # bias before InstanceNorm (affine=False) cancels exactly
    B, T, Cin = x.shape
    H = w1.shape[2]

    # bf16 weights: native MXU rate on v6e/v7x, half the weight DMA/VMEM.
    w1b = w1.astype(jnp.bfloat16)
    w2b = w2.astype(jnp.bfloat16)
    w3b = w3.astype(jnp.bfloat16)

    # Explicit VMEM budget: f32 pad/acc scratch + double-buffered operands + slack.
    f32b, bf16b = 4, 2
    scratch = f32b * ((T + 2 * PAD) * (Cin + H) + T * H)
    weights = bf16b * K * (Cin * H + H * H + H * 2) + f32b * 2
    dbl_io = 2 * (f32b * T * Cin + f32b * T * 2 + weights)
    slack = 8 * f32b * T * H
    vmem_limit = max(8 << 20, min(int(1.5 * (scratch + dbl_io + slack)), 48 << 20))

    grid_spec = pltpu.PrefetchScalarGridSpec(
        num_scalar_prefetch=0,
        grid=(B,),
        in_specs=[
            pl.BlockSpec((1, T, Cin), lambda b: (b, 0, 0)),
            pl.BlockSpec((K, Cin, H), lambda b: (0, 0, 0)),
            pl.BlockSpec((K, H, H),   lambda b: (0, 0, 0)),
            pl.BlockSpec((K, H, 2),   lambda b: (0, 0, 0)),
            pl.BlockSpec((1, 2),      lambda b: (0, 0)),
        ],
        out_specs=pl.BlockSpec((1, T, 2), lambda b: (b, 0, 0)),
        scratch_shapes=[
            pltpu.VMEM((T + 2 * PAD, Cin), jnp.float32),  # padded conv1 input
            pltpu.VMEM((T + 2 * PAD, H), jnp.float32),    # padded hidden activations
            pltpu.VMEM((T, H), jnp.float32),              # f32 conv accumulator
        ],
    )

    out = pl.pallas_call(
        pitch_kernel,
        out_shape=jax.ShapeDtypeStruct((B, T, 2), jnp.float32),
        grid_spec=grid_spec,
        compiler_params=pltpu.CompilerParams(
            dimension_semantics=("parallel",),  # disjoint output per b -> megacore-safe
            vmem_limit_bytes=vmem_limit,
        ),
    )(x, w1b, w2b, w3b, b3)

    pitch = out[:, :, 0]
    voiced = out[:, :, 1]
    return pitch, voiced


def ref_forward(x, params):
    """Pure-JAX reference replicating the PyTorch forward (NCW internally)."""
    w1, b1, w2, b2, w3, b3 = params

    def conv1d(h, w, b):  # h: (B, C, T); w: (K, Cin, Cout); b: (1, Cout)
        wt = jnp.transpose(w, (2, 1, 0))  # (Cout, Cin, K)
        y = lax.conv_general_dilated(h, wt, window_strides=(1,),
                                     padding=((PAD, PAD),),
                                     dimension_numbers=('NCH', 'OIH', 'NCH'))
        return y + b[0][None, :, None]

    def inorm(h):
        mean = jnp.mean(h, axis=2, keepdims=True)
        var = jnp.mean((h - mean) ** 2, axis=2, keepdims=True)
        return (h - mean) / jnp.sqrt(var + EPS)

    h = jnp.transpose(x, (0, 2, 1))  # (B, C, T)
    h = jax.nn.relu(inorm(conv1d(h, w1, b1)))
    h = jax.nn.relu(inorm(conv1d(h, w2, b2)))
    y = conv1d(h, w3, b3)
    return y[:, 0, :], jax.nn.sigmoid(y[:, 1, :])


if __name__ == "__main__":
    B, T, Cin, H = 2, 16, 32, 32  # small synthetic shapes (module defaults 256/256)
    key = jax.random.PRNGKey(0)
    ks = jax.random.split(key, 4)

    x = jax.random.normal(ks[0], (B, T, Cin), jnp.float32)

    def init_conv(k, cin, cout):
        kw, kb = jax.random.split(k)
        w = jax.random.normal(kw, (K, cin, cout), jnp.float32) * 0.1  # (K, Cin, Cout)
        b = jax.random.normal(kb, (1, cout), jnp.float32) * 0.1
        return w, b

    w1, b1 = init_conv(ks[1], Cin, H)
    w2, b2 = init_conv(ks[2], H, H)
    w3, b3 = init_conv(ks[3], H, 2)
    params = (w1, b1, w2, b2, w3, b3)

    pitch, voiced = pitch_predictor(x, params)
    jax.block_until_ready((pitch, voiced))

    rp, rv = ref_forward(x, params)
    assert pitch.shape == (B, T) and voiced.shape == (B, T)
    # bf16 MXU operands with f32 accumulation -> relaxed tolerance vs f32 ref.
    assert jnp.allclose(pitch, rp, atol=1e-1, rtol=1e-1), \
        float(jnp.max(jnp.abs(pitch - rp)))
    assert jnp.allclose(voiced, rv, atol=1e-1, rtol=1e-1), \
        float(jnp.max(jnp.abs(voiced - rv)))
    print("KERNEL_OK")
</pallas_src>

<mosaic_0001>
module attributes {stable_mosaic.version = 11 : i64} {
  func.func @pitch_kernel(%arg0: i32, %arg1: memref<1x16x32xf32, #tpu.memory_space<vmem>>, %arg2: memref<5x32x32xbf16, #tpu.memory_space<vmem>>, %arg3: memref<5x32x32xbf16, #tpu.memory_space<vmem>>, %arg4: memref<5x32x2xbf16, #tpu.memory_space<vmem>>, %arg5: memref<1x2xf32, #tpu.memory_space<vmem>>, %arg6: memref<1x16x2xf32, #tpu.memory_space<vmem>>, %arg7: memref<20x32xf32, #tpu.memory_space<vmem>>, %arg8: memref<20x32xf32, #tpu.memory_space<vmem>>, %arg9: memref<16x32xf32, #tpu.memory_space<vmem>>) attributes {dimension_semantics = [#tpu.dimension_semantics<parallel>], iteration_bounds = array<i64: 2>, scalar_prefetch = 0 : i64, scratch_operands = 3 : i64, tpu.core_type = #tpu.core_type<tc>, window_params = [{transform_indices = @transform_0, window_bounds = array<i64: 1, 16, 32>}, {pipeline_mode = #tpu.pipeline_mode<synchronous>, transform_indices = @transform_1, window_bounds = array<i64: 5, 32, 32>}, {pipeline_mode = #tpu.pipeline_mode<synchronous>, transform_indices = @transform_2, window_bounds = array<i64: 5, 32, 32>}, {pipeline_mode = #tpu.pipeline_mode<synchronous>, transform_indices = @transform_3, window_bounds = array<i64: 5, 32, 2>}, {pipeline_mode = #tpu.pipeline_mode<synchronous>, transform_indices = @transform_4, window_bounds = array<i64: 1, 2>}, {transform_indices = @transform_5, window_bounds = array<i64: 1, 16, 2>}]} {
    %c0 = arith.constant 0 : index
    %c0_0 = arith.constant 0 : index
    %c0_1 = arith.constant 0 : index
    %0 = vector.load %arg1[%c0, %c0_0, %c0_1] : memref<1x16x32xf32, #tpu.memory_space<vmem>>, vector<1x16x32xf32>
    %1 = vector.shape_cast %0 : vector<1x16x32xf32> to vector<16x32xf32>
    %cst = arith.constant 0.000000e+00 : f32
    %2 = vector.broadcast %cst : f32 to vector<2x32xf32>
    %c0_2 = arith.constant 0 : index
    %c0_3 = arith.constant 0 : index
    %3 = vector.load %arg7[%c0_2, %c0_3] : memref<20x32xf32, #tpu.memory_space<vmem>>, vector<2x32xf32>
    tpu.vector_store %arg7[%c0_2, %c0_3], %2 {strides = array<i32>} : memref<20x32xf32, #tpu.memory_space<vmem>>, vector<2x32xf32>,
    %c18 = arith.constant 18 : index
    %c0_4 = arith.constant 0 : index
    %4 = vector.load %arg7[%c18, %c0_4] : memref<20x32xf32, #tpu.memory_space<vmem>>, vector<2x32xf32>
    tpu.vector_store %arg7[%c18, %c0_4], %2 {strides = array<i32>} : memref<20x32xf32, #tpu.memory_space<vmem>>, vector<2x32xf32>,
    %c2 = arith.constant 2 : index
    %c0_5 = arith.constant 0 : index
    %5 = vector.load %arg7[%c2, %c0_5] : memref<20x32xf32, #tpu.memory_space<vmem>>, vector<16x32xf32>
    tpu.vector_store %arg7[%c2, %c0_5], %1 {strides = array<i32>} : memref<20x32xf32, #tpu.memory_space<vmem>>, vector<16x32xf32>,
    %c0_6 = arith.constant 0 : index
    %c0_7 = arith.constant 0 : index
    %6 = vector.load %arg7[%c0_6, %c0_7] : memref<20x32xf32, #tpu.memory_space<vmem>>, vector<16x32xf32>
    %7 = arith.truncf %6 : vector<16x32xf32> to vector<16x32xbf16>
    %c0_8 = arith.constant 0 : index
    %c0_9 = arith.constant 0 : index
    %c0_10 = arith.constant 0 : index
    %8 = vector.load %arg2[%c0_8, %c0_9, %c0_10] : memref<5x32x32xbf16, #tpu.memory_space<vmem>>, vector<1x32x32xbf16>
    %9 = vector.shape_cast %8 : vector<1x32x32xbf16> to vector<32x32xbf16>
    %cst_11 = arith.constant dense<0.000000e+00> : vector<16x32xf32>
    %10 = tpu.matmul %7, %9, %cst_11 {dimension_numbers = #tpu.dot_dimension_numbers<[1], [0], [0], [1], [0, 0, 1, 1], [], []>} : vector<16x32xbf16>, vector<32x32xbf16>, vector<16x32xf32> -> vector<16x32xf32>
    %c0_12 = arith.constant 0 : index
    %c0_13 = arith.constant 0 : index
    %11 = vector.load %arg9[%c0_12, %c0_13] : memref<16x32xf32, #tpu.memory_space<vmem>>, vector<16x32xf32>
    tpu.vector_store %arg9[%c0_12, %c0_13], %10 {strides = array<i32>} : memref<16x32xf32, #tpu.memory_space<vmem>>, vector<16x32xf32>,
    %c0_14 = arith.constant 0 : index
    %c0_15 = arith.constant 0 : index
    %12 = vector.load %arg9[%c0_14, %c0_15] : memref<16x32xf32, #tpu.memory_space<vmem>>, vector<16x32xf32>
    %c1 = arith.constant 1 : index
    %c0_16 = arith.constant 0 : index
    %13 = vector.load %arg7[%c1, %c0_16] : memref<20x32xf32, #tpu.memory_space<vmem>>, vector<16x32xf32>
    %14 = arith.truncf %13 : vector<16x32xf32> to vector<16x32xbf16>
    %c1_17 = arith.constant 1 : index
    %c0_18 = arith.constant 0 : index
    %c0_19 = arith.constant 0 : index
    %15 = vector.load %arg2[%c1_17, %c0_18, %c0_19] : memref<5x32x32xbf16, #tpu.memory_space<vmem>>, vector<1x32x32xbf16>
    %16 = vector.shape_cast %15 : vector<1x32x32xbf16> to vector<32x32xbf16>
    %cst_20 = arith.constant dense<0.000000e+00> : vector<16x32xf32>
    %17 = tpu.matmul %14, %16, %cst_20 {dimension_numbers = #tpu.dot_dimension_numbers<[1], [0], [0], [1], [0, 0, 1, 1], [], []>} : vector<16x32xbf16>, vector<32x32xbf16>, vector<16x32xf32> -> vector<16x32xf32>
    %18 = arith.addf %12, %17 : vector<16x32xf32>
    %c0_21 = arith.constant 0 : index
    %c0_22 = arith.constant 0 : index
    %19 = vector.load %arg9[%c0_21, %c0_22] : memref<16x32xf32, #tpu.memory_space<vmem>>, vector<16x32xf32>
    tpu.vector_store %arg9[%c0_21, %c0_22], %18 {strides = array<i32>} : memref<16x32xf32, #tpu.memory_space<vmem>>, vector<16x32xf32>,
    %c0_23 = arith.constant 0 : index
    %c0_24 = arith.constant 0 : index
    %20 = vector.load %arg9[%c0_23, %c0_24] : memref<16x32xf32, #tpu.memory_space<vmem>>, vector<16x32xf32>
    %c2_25 = arith.constant 2 : index
    %c0_26 = arith.constant 0 : index
    %21 = vector.load %arg7[%c2_25, %c0_26] : memref<20x32xf32, #tpu.memory_space<vmem>>, vector<16x32xf32>
    %22 = arith.truncf %21 : vector<16x32xf32> to vector<16x32xbf16>
    %c2_27 = arith.constant 2 : index
    %c0_28 = arith.constant 0 : index
    %c0_29 = arith.constant 0 : index
    %23 = vector.load %arg2[%c2_27, %c0_28, %c0_29] : memref<5x32x32xbf16, #tpu.memory_space<vmem>>, vector<1x32x32xbf16>
    %24 = vector.shape_cast %23 : vector<1x32x32xbf16> to vector<32x32xbf16>
    %cst_30 = arith.constant dense<0.000000e+00> : vector<16x32xf32>
    %25 = tpu.matmul %22, %24, %cst_30 {dimension_numbers = #tpu.dot_dimension_numbers<[1], [0], [0], [1], [0, 0, 1, 1], [], []>} : vector<16x32xbf16>, vector<32x32xbf16>, vector<16x32xf32> -> vector<16x32xf32>
    %26 = arith.addf %20, %25 : vector<16x32xf32>
    %c0_31 = arith.constant 0 : index
    %c0_32 = arith.constant 0 : index
    %27 = vector.load %arg9[%c0_31, %c0_32] : memref<16x32xf32, #tpu.memory_space<vmem>>, vector<16x32xf32>
    tpu.vector_store %arg9[%c0_31, %c0_32], %26 {strides = array<i32>} : memref<16x32xf32, #tpu.memory_space<vmem>>, vector<16x32xf32>,
    %c0_33 = arith.constant 0 : index
    %c0_34 = arith.constant 0 : index
    %28 = vector.load %arg9[%c0_33, %c0_34] : memref<16x32xf32, #tpu.memory_space<vmem>>, vector<16x32xf32>
    %c3 = arith.constant 3 : index
    %c0_35 = arith.constant 0 : index
    %29 = vector.load %arg7[%c3, %c0_35] : memref<20x32xf32, #tpu.memory_space<vmem>>, vector<16x32xf32>
    %30 = arith.truncf %29 : vector<16x32xf32> to vector<16x32xbf16>
    %c3_36 = arith.constant 3 : index
    %c0_37 = arith.constant 0 : index
    %c0_38 = arith.constant 0 : index
    %31 = vector.load %arg2[%c3_36, %c0_37, %c0_38] : memref<5x32x32xbf16, #tpu.memory_space<vmem>>, vector<1x32x32xbf16>
    %32 = vector.shape_cast %31 : vector<1x32x32xbf16> to vector<32x32xbf16>
    %cst_39 = arith.constant dense<0.000000e+00> : vector<16x32xf32>
    %33 = tpu.matmul %30, %32, %cst_39 {dimension_numbers = #tpu.dot_dimension_numbers<[1], [0], [0], [1], [0, 0, 1, 1], [], []>} : vector<16x32xbf16>, vector<32x32xbf16>, vector<16x32xf32> -> vector<16x32xf32>
    %34 = arith.addf %28, %33 : vector<16x32xf32>
    %c0_40 = arith.constant 0 : index
    %c0_41 = arith.constant 0 : index
    %35 = vector.load %arg9[%c0_40, %c0_41] : memref<16x32xf32, #tpu.memory_space<vmem>>, vector<16x32xf32>
    tpu.vector_store %arg9[%c0_40, %c0_41], %34 {strides = array<i32>} : memref<16x32xf32, #tpu.memory_space<vmem>>, vector<16x32xf32>,
    %c0_42 = arith.constant 0 : index
    %c0_43 = arith.constant 0 : index
    %36 = vector.load %arg9[%c0_42, %c0_43] : memref<16x32xf32, #tpu.memory_space<vmem>>, vector<16x32xf32>
    %c4 = arith.constant 4 : index
    %c0_44 = arith.constant 0 : index
    %37 = vector.load %arg7[%c4, %c0_44] : memref<20x32xf32, #tpu.memory_space<vmem>>, vector<16x32xf32>
    %38 = arith.truncf %37 : vector<16x32xf32> to vector<16x32xbf16>
    %c4_45 = arith.constant 4 : index
    %c0_46 = arith.constant 0 : index
    %c0_47 = arith.constant 0 : index
    %39 = vector.load %arg2[%c4_45, %c0_46, %c0_47] : memref<5x32x32xbf16, #tpu.memory_space<vmem>>, vector<1x32x32xbf16>
    %40 = vector.shape_cast %39 : vector<1x32x32xbf16> to vector<32x32xbf16>
    %cst_48 = arith.constant dense<0.000000e+00> : vector<16x32xf32>
    %41 = tpu.matmul %38, %40, %cst_48 {dimension_numbers = #tpu.dot_dimension_numbers<[1], [0], [0], [1], [0, 0, 1, 1], [], []>} : vector<16x32xbf16>, vector<32x32xbf16>, vector<16x32xf32> -> vector<16x32xf32>
    %42 = arith.addf %36, %41 : vector<16x32xf32>
    %c0_49 = arith.constant 0 : index
    %c0_50 = arith.constant 0 : index
    %43 = vector.load %arg9[%c0_49, %c0_50] : memref<16x32xf32, #tpu.memory_space<vmem>>, vector<16x32xf32>
    tpu.vector_store %arg9[%c0_49, %c0_50], %42 {strides = array<i32>} : memref<16x32xf32, #tpu.memory_space<vmem>>, vector<16x32xf32>,
    %c0_51 = arith.constant 0 : index
    %c0_52 = arith.constant 0 : index
    %44 = vector.load %arg9[%c0_51, %c0_52] : memref<16x32xf32, #tpu.memory_space<vmem>>, vector<16x32xf32>
    %cst_53 = arith.constant dense<0.000000e+00> : vector<32xf32>
    %45 = vector.multi_reduction <add>, %44, %cst_53 [0] : vector<16x32xf32> to vector<32xf32>
    %46 = vector.shape_cast %45 : vector<32xf32> to vector<1x32xf32>
    %cst_54 = arith.constant 6.250000e-02 : f32
    %47 = vector.broadcast %cst_54 : f32 to vector<1x32xf32>
    %48 = arith.mulf %46, %47 : vector<1x32xf32>
    %49 = arith.mulf %44, %44 : vector<16x32xf32>
    %cst_55 = arith.constant dense<0.000000e+00> : vector<32xf32>
    %50 = vector.multi_reduction <add>, %49, %cst_55 [0] : vector<16x32xf32> to vector<32xf32>
    %51 = vector.shape_cast %50 : vector<32xf32> to vector<1x32xf32>
    %cst_56 = arith.constant 6.250000e-02 : f32
    %52 = vector.broadcast %cst_56 : f32 to vector<1x32xf32>
    %53 = arith.mulf %51, %52 : vector<1x32xf32>
    %54 = arith.mulf %48, %48 : vector<1x32xf32>
    %55 = arith.subf %53, %54 : vector<1x32xf32>
    %56 = vector.broadcast %48 : vector<1x32xf32> to vector<16x32xf32>
    %57 = arith.subf %44, %56 : vector<16x32xf32>
    %cst_57 = arith.constant 9.99999974E-6 : f32
    %58 = vector.broadcast %cst_57 : f32 to vector<1x32xf32>
    %59 = arith.addf %55, %58 : vector<1x32xf32>
    %60 = math.rsqrt %59 : vector<1x32xf32>
    %61 = vector.broadcast %60 : vector<1x32xf32> to vector<16x32xf32>
    %62 = arith.mulf %57, %61 : vector<16x32xf32>
    %cst_58 = arith.constant 0.000000e+00 : f32
    %63 = vector.broadcast %cst_58 : f32 to vector<16x32xf32>
    %64 = arith.maximumf %62, %63 : vector<16x32xf32>
    %cst_59 = arith.constant 0.000000e+00 : f32
    %65 = vector.broadcast %cst_59 : f32 to vector<2x32xf32>
    %c0_60 = arith.constant 0 : index
    %c0_61 = arith.constant 0 : index
    %66 = vector.load %arg8[%c0_60, %c0_61] : memref<20x32xf32, #tpu.memory_space<vmem>>, vector<2x32xf32>
    tpu.vector_store %arg8[%c0_60, %c0_61], %65 {strides = array<i32>} : memref<20x32xf32, #tpu.memory_space<vmem>>, vector<2x32xf32>,
    %c18_62 = arith.constant 18 : index
    %c0_63 = arith.constant 0 : index
    %67 = vector.load %arg8[%c18_62, %c0_63] : memref<20x32xf32, #tpu.memory_space<vmem>>, vector<2x32xf32>
    tpu.vector_store %arg8[%c18_62, %c0_63], %65 {strides = array<i32>} : memref<20x32xf32, #tpu.memory_space<vmem>>, vector<2x32xf32>,
    %c2_64 = arith.constant 2 : index
    %c0_65 = arith.constant 0 : index
    %68 = vector.load %arg8[%c2_64, %c0_65] : memref<20x32xf32, #tpu.memory_space<vmem>>, vector<16x32xf32>
    tpu.vector_store %arg8[%c2_64, %c0_65], %64 {strides = array<i32>} : memref<20x32xf32, #tpu.memory_space<vmem>>, vector<16x32xf32>,
    %c0_66 = arith.constant 0 : index
    %c0_67 = arith.constant 0 : index
    %69 = vector.load %arg8[%c0_66, %c0_67] : memref<20x32xf32, #tpu.memory_space<vmem>>, vector<16x32xf32>
    %70 = arith.truncf %69 : vector<16x32xf32> to vector<16x32xbf16>
    %c0_68 = arith.constant 0 : index
    %c0_69 = arith.constant 0 : index
    %c0_70 = arith.constant 0 : index
    %71 = vector.load %arg3[%c0_68, %c0_69, %c0_70] : memref<5x32x32xbf16, #tpu.memory_space<vmem>>, vector<1x32x32xbf16>
    %72 = vector.shape_cast %71 : vector<1x32x32xbf16> to vector<32x32xbf16>
    %cst_71 = arith.constant dense<0.000000e+00> : vector<16x32xf32>
    %73 = tpu.matmul %70, %72, %cst_71 {dimension_numbers = #tpu.dot_dimension_numbers<[1], [0], [0], [1], [0, 0, 1, 1], [], []>} : vector<16x32xbf16>, vector<32x32xbf16>, vector<16x32xf32> -> vector<16x32xf32>
    %c0_72 = arith.constant 0 : index
    %c0_73 = arith.constant 0 : index
    %74 = vector.load %arg9[%c0_72, %c0_73] : memref<16x32xf32, #tpu.memory_space<vmem>>, vector<16x32xf32>
    tpu.vector_store %arg9[%c0_72, %c0_73], %73 {strides = array<i32>} : memref<16x32xf32, #tpu.memory_space<vmem>>, vector<16x32xf32>,
    %c0_74 = arith.constant 0 : index
    %c0_75 = arith.constant 0 : index
    %75 = vector.load %arg9[%c0_74, %c0_75] : memref<16x32xf32, #tpu.memory_space<vmem>>, vector<16x32xf32>
    %c1_76 = arith.constant 1 : index
    %c0_77 = arith.constant 0 : index
    %76 = vector.load %arg8[%c1_76, %c0_77] : memref<20x32xf32, #tpu.memory_space<vmem>>, vector<16x32xf32>
    %77 = arith.truncf %76 : vector<16x32xf32> to vector<16x32xbf16>
    %c1_78 = arith.constant 1 : index
    %c0_79 = arith.constant 0 : index
    %c0_80 = arith.constant 0 : index
    %78 = vector.load %arg3[%c1_78, %c0_79, %c0_80] : memref<5x32x32xbf16, #tpu.memory_space<vmem>>, vector<1x32x32xbf16>
    %79 = vector.shape_cast %78 : vector<1x32x32xbf16> to vector<32x32xbf16>
    %cst_81 = arith.constant dense<0.000000e+00> : vector<16x32xf32>
    %80 = tpu.matmul %77, %79, %cst_81 {dimension_numbers = #tpu.dot_dimension_numbers<[1], [0], [0], [1], [0, 0, 1, 1], [], []>} : vector<16x32xbf16>, vector<32x32xbf16>, vector<16x32xf32> -> vector<16x32xf32>
    %81 = arith.addf %75, %80 : vector<16x32xf32>
    %c0_82 = arith.constant 0 : index
    %c0_83 = arith.constant 0 : index
    %82 = vector.load %arg9[%c0_82, %c0_83] : memref<16x32xf32, #tpu.memory_space<vmem>>, vector<16x32xf32>
    tpu.vector_store %arg9[%c0_82, %c0_83], %81 {strides = array<i32>} : memref<16x32xf32, #tpu.memory_space<vmem>>, vector<16x32xf32>,
    %c0_84 = arith.constant 0 : index
    %c0_85 = arith.constant 0 : index
    %83 = vector.load %arg9[%c0_84, %c0_85] : memref<16x32xf32, #tpu.memory_space<vmem>>, vector<16x32xf32>
    %c2_86 = arith.constant 2 : index
    %c0_87 = arith.constant 0 : index
    %84 = vector.load %arg8[%c2_86, %c0_87] : memref<20x32xf32, #tpu.memory_space<vmem>>, vector<16x32xf32>
    %85 = arith.truncf %84 : vector<16x32xf32> to vector<16x32xbf16>
    %c2_88 = arith.constant 2 : index
    %c0_89 = arith.constant 0 : index
    %c0_90 = arith.constant 0 : index
    %86 = vector.load %arg3[%c2_88, %c0_89, %c0_90] : memref<5x32x32xbf16, #tpu.memory_space<vmem>>, vector<1x32x32xbf16>
    %87 = vector.shape_cast %86 : vector<1x32x32xbf16> to vector<32x32xbf16>
    %cst_91 = arith.constant dense<0.000000e+00> : vector<16x32xf32>
    %88 = tpu.matmul %85, %87, %cst_91 {dimension_numbers = #tpu.dot_dimension_numbers<[1], [0], [0], [1], [0, 0, 1, 1], [], []>} : vector<16x32xbf16>, vector<32x32xbf16>, vector<16x32xf32> -> vector<16x32xf32>
    %89 = arith.addf %83, %88 : vector<16x32xf32>
    %c0_92 = arith.constant 0 : index
    %c0_93 = arith.constant 0 : index
    %90 = vector.load %arg9[%c0_92, %c0_93] : memref<16x32xf32, #tpu.memory_space<vmem>>, vector<16x32xf32>
    tpu.vector_store %arg9[%c0_92, %c0_93], %89 {strides = array<i32>} : memref<16x32xf32, #tpu.memory_space<vmem>>, vector<16x32xf32>,
    %c0_94 = arith.constant 0 : index
    %c0_95 = arith.constant 0 : index
    %91 = vector.load %arg9[%c0_94, %c0_95] : memref<16x32xf32, #tpu.memory_space<vmem>>, vector<16x32xf32>
    %c3_96 = arith.constant 3 : index
    %c0_97 = arith.constant 0 : index
    %92 = vector.load %arg8[%c3_96, %c0_97] : memref<20x32xf32, #tpu.memory_space<vmem>>, vector<16x32xf32>
    %93 = arith.truncf %92 : vector<16x32xf32> to vector<16x32xbf16>
    %c3_98 = arith.constant 3 : index
    %c0_99 = arith.constant 0 : index
    %c0_100 = arith.constant 0 : index
    %94 = vector.load %arg3[%c3_98, %c0_99, %c0_100] : memref<5x32x32xbf16, #tpu.memory_space<vmem>>, vector<1x32x32xbf16>
    %95 = vector.shape_cast %94 : vector<1x32x32xbf16> to vector<32x32xbf16>
    %cst_101 = arith.constant dense<0.000000e+00> : vector<16x32xf32>
    %96 = tpu.matmul %93, %95, %cst_101 {dimension_numbers = #tpu.dot_dimension_numbers<[1], [0], [0], [1], [0, 0, 1, 1], [], []>} : vector<16x32xbf16>, vector<32x32xbf16>, vector<16x32xf32> -> vector<16x32xf32>
    %97 = arith.addf %91, %96 : vector<16x32xf32>
    %c0_102 = arith.constant 0 : index
    %c0_103 = arith.constant 0 : index
    %98 = vector.load %arg9[%c0_102, %c0_103] : memref<16x32xf32, #tpu.memory_space<vmem>>, vector<16x32xf32>
    tpu.vector_store %arg9[%c0_102, %c0_103], %97 {strides = array<i32>} : memref<16x32xf32, #tpu.memory_space<vmem>>, vector<16x32xf32>,
    %c0_104 = arith.constant 0 : index
    %c0_105 = arith.constant 0 : index
    %99 = vector.load %arg9[%c0_104, %c0_105] : memref<16x32xf32, #tpu.memory_space<vmem>>, vector<16x32xf32>
    %c4_106 = arith.constant 4 : index
    %c0_107 = arith.constant 0 : index
    %100 = vector.load %arg8[%c4_106, %c0_107] : memref<20x32xf32, #tpu.memory_space<vmem>>, vector<16x32xf32>
    %101 = arith.truncf %100 : vector<16x32xf32> to vector<16x32xbf16>
    %c4_108 = arith.constant 4 : index
    %c0_109 = arith.constant 0 : index
    %c0_110 = arith.constant 0 : index
    %102 = vector.load %arg3[%c4_108, %c0_109, %c0_110] : memref<5x32x32xbf16, #tpu.memory_space<vmem>>, vector<1x32x32xbf16>
    %103 = vector.shape_cast %102 : vector<1x32x32xbf16> to vector<32x32xbf16>
    %cst_111 = arith.constant dense<0.000000e+00> : vector<16x32xf32>
    %104 = tpu.matmul %101, %103, %cst_111 {dimension_numbers = #tpu.dot_dimension_numbers<[1], [0], [0], [1], [0, 0, 1, 1], [], []>} : vector<16x32xbf16>, vector<32x32xbf16>, vector<16x32xf32> -> vector<16x32xf32>
    %105 = arith.addf %99, %104 : vector<16x32xf32>
    %c0_112 = arith.constant 0 : index
    %c0_113 = arith.constant 0 : index
    %106 = vector.load %arg9[%c0_112, %c0_113] : memref<16x32xf32, #tpu.memory_space<vmem>>, vector<16x32xf32>
    tpu.vector_store %arg9[%c0_112, %c0_113], %105 {strides = array<i32>} : memref<16x32xf32, #tpu.memory_space<vmem>>, vector<16x32xf32>,
    %c0_114 = arith.constant 0 : index
    %c0_115 = arith.constant 0 : index
    %107 = vector.load %arg9[%c0_114, %c0_115] : memref<16x32xf32, #tpu.memory_space<vmem>>, vector<16x32xf32>
    %cst_116 = arith.constant dense<0.000000e+00> : vector<32xf32>
    %108 = vector.multi_reduction <add>, %107, %cst_116 [0] : vector<16x32xf32> to vector<32xf32>
    %109 = vector.shape_cast %108 : vector<32xf32> to vector<1x32xf32>
    %cst_117 = arith.constant 6.250000e-02 : f32
    %110 = vector.broadcast %cst_117 : f32 to vector<1x32xf32>
    %111 = arith.mulf %109, %110 : vector<1x32xf32>
    %112 = arith.mulf %107, %107 : vector<16x32xf32>
    %cst_118 = arith.constant dense<0.000000e+00> : vector<32xf32>
    %113 = vector.multi_reduction <add>, %112, %cst_118 [0] : vector<16x32xf32> to vector<32xf32>
    %114 = vector.shape_cast %113 : vector<32xf32> to vector<1x32xf32>
    %cst_119 = arith.constant 6.250000e-02 : f32
    %115 = vector.broadcast %cst_119 : f32 to vector<1x32xf32>
    %116 = arith.mulf %114, %115 : vector<1x32xf32>
    %117 = arith.mulf %111, %111 : vector<1x32xf32>
    %118 = arith.subf %116, %117 : vector<1x32xf32>
    %119 = vector.broadcast %111 : vector<1x32xf32> to vector<16x32xf32>
    %120 = arith.subf %107, %119 : vector<16x32xf32>
    %cst_120 = arith.constant 9.99999974E-6 : f32
    %121 = vector.broadcast %cst_120 : f32 to vector<1x32xf32>
    %122 = arith.addf %118, %121 : vector<1x32xf32>
    %123 = math.rsqrt %122 : vector<1x32xf32>
    %124 = vector.broadcast %123 : vector<1x32xf32> to vector<16x32xf32>
    %125 = arith.mulf %120, %124 : vector<16x32xf32>
    %cst_121 = arith.constant 0.000000e+00 : f32
    %126 = vector.broadcast %cst_121 : f32 to vector<16x32xf32>
    %127 = arith.maximumf %125, %126 : vector<16x32xf32>
    %c2_122 = arith.constant 2 : index
    %c0_123 = arith.constant 0 : index
    %128 = vector.load %arg8[%c2_122, %c0_123] : memref<20x32xf32, #tpu.memory_space<vmem>>, vector<16x32xf32>
    tpu.vector_store %arg8[%c2_122, %c0_123], %127 {strides = array<i32>} : memref<20x32xf32, #tpu.memory_space<vmem>>, vector<16x32xf32>,
    %c0_124 = arith.constant 0 : index
    %c0_125 = arith.constant 0 : index
    %129 = vector.load %arg8[%c0_124, %c0_125] : memref<20x32xf32, #tpu.memory_space<vmem>>, vector<16x32xf32>
    %130 = arith.truncf %129 : vector<16x32xf32> to vector<16x32xbf16>
    %c0_126 = arith.constant 0 : index
    %c0_127 = arith.constant 0 : index
    %c0_128 = arith.constant 0 : index
    %131 = vector.load %arg4[%c0_126, %c0_127, %c0_128] : memref<5x32x2xbf16, #tpu.memory_space<vmem>>, vector<1x32x2xbf16>
    %132 = vector.shape_cast %131 : vector<1x32x2xbf16> to vector<32x2xbf16>
    %cst_129 = arith.constant dense<0.000000e+00> : vector<16x2xf32>
    %133 = tpu.matmul %130, %132, %cst_129 {dimension_numbers = #tpu.dot_dimension_numbers<[1], [0], [0], [1], [0, 0, 1, 1], [], []>} : vector<16x32xbf16>, vector<32x2xbf16>, vector<16x2xf32> -> vector<16x2xf32>
    %c1_130 = arith.constant 1 : index
    %c0_131 = arith.constant 0 : index
    %134 = vector.load %arg8[%c1_130, %c0_131] : memref<20x32xf32, #tpu.memory_space<vmem>>, vector<16x32xf32>
    %135 = arith.truncf %134 : vector<16x32xf32> to vector<16x32xbf16>
    %c1_132 = arith.constant 1 : index
    %c0_133 = arith.constant 0 : index
    %c0_134 = arith.constant 0 : index
    %136 = vector.load %arg4[%c1_132, %c0_133, %c0_134] : memref<5x32x2xbf16, #tpu.memory_space<vmem>>, vector<1x32x2xbf16>
    %137 = vector.shape_cast %136 : vector<1x32x2xbf16> to vector<32x2xbf16>
    %cst_135 = arith.constant dense<0.000000e+00> : vector<16x2xf32>
    %138 = tpu.matmul %135, %137, %cst_135 {dimension_numbers = #tpu.dot_dimension_numbers<[1], [0], [0], [1], [0, 0, 1, 1], [], []>} : vector<16x32xbf16>, vector<32x2xbf16>, vector<16x2xf32> -> vector<16x2xf32>
    %139 = arith.addf %133, %138 : vector<16x2xf32>
    %c2_136 = arith.constant 2 : index
    %c0_137 = arith.constant 0 : index
    %140 = vector.load %arg8[%c2_136, %c0_137] : memref<20x32xf32, #tpu.memory_space<vmem>>, vector<16x32xf32>
    %141 = arith.truncf %140 : vector<16x32xf32> to vector<16x32xbf16>
    %c2_138 = arith.constant 2 : index
    %c0_139 = arith.constant 0 : index
    %c0_140 = arith.constant 0 : index
    %142 = vector.load %arg4[%c2_138, %c0_139, %c0_140] : memref<5x32x2xbf16, #tpu.memory_space<vmem>>, vector<1x32x2xbf16>
    %143 = vector.shape_cast %142 : vector<1x32x2xbf16> to vector<32x2xbf16>
    %cst_141 = arith.constant dense<0.000000e+00> : vector<16x2xf32>
    %144 = tpu.matmul %141, %143, %cst_141 {dimension_numbers = #tpu.dot_dimension_numbers<[1], [0], [0], [1], [0, 0, 1, 1], [], []>} : vector<16x32xbf16>, vector<32x2xbf16>, vector<16x2xf32> -> vector<16x2xf32>
    %145 = arith.addf %139, %144 : vector<16x2xf32>
    %c3_142 = arith.constant 3 : index
    %c0_143 = arith.constant 0 : index
    %146 = vector.load %arg8[%c3_142, %c0_143] : memref<20x32xf32, #tpu.memory_space<vmem>>, vector<16x32xf32>
    %147 = arith.truncf %146 : vector<16x32xf32> to vector<16x32xbf16>
    %c3_144 = arith.constant 3 : index
    %c0_145 = arith.constant 0 : index
    %c0_146 = arith.constant 0 : index
    %148 = vector.load %arg4[%c3_144, %c0_145, %c0_146] : memref<5x32x2xbf16, #tpu.memory_space<vmem>>, vector<1x32x2xbf16>
    %149 = vector.shape_cast %148 : vector<1x32x2xbf16> to vector<32x2xbf16>
    %cst_147 = arith.constant dense<0.000000e+00> : vector<16x2xf32>
    %150 = tpu.matmul %147, %149, %cst_147 {dimension_numbers = #tpu.dot_dimension_numbers<[1], [0], [0], [1], [0, 0, 1, 1], [], []>} : vector<16x32xbf16>, vector<32x2xbf16>, vector<16x2xf32> -> vector<16x2xf32>
    %151 = arith.addf %145, %150 : vector<16x2xf32>
    %c4_148 = arith.constant 4 : index
    %c0_149 = arith.constant 0 : index
    %152 = vector.load %arg8[%c4_148, %c0_149] : memref<20x32xf32, #tpu.memory_space<vmem>>, vector<16x32xf32>
    %153 = arith.truncf %152 : vector<16x32xf32> to vector<16x32xbf16>
    %c4_150 = arith.constant 4 : index
    %c0_151 = arith.constant 0 : index
    %c0_152 = arith.constant 0 : index
    %154 = vector.load %arg4[%c4_150, %c0_151, %c0_152] : memref<5x32x2xbf16, #tpu.memory_space<vmem>>, vector<1x32x2xbf16>
    %155 = vector.shape_cast %154 : vector<1x32x2xbf16> to vector<32x2xbf16>
    %cst_153 = arith.constant dense<0.000000e+00> : vector<16x2xf32>
    %156 = tpu.matmul %153, %155, %cst_153 {dimension_numbers = #tpu.dot_dimension_numbers<[1], [0], [0], [1], [0, 0, 1, 1], [], []>} : vector<16x32xbf16>, vector<32x2xbf16>, vector<16x2xf32> -> vector<16x2xf32>
    %157 = arith.addf %151, %156 : vector<16x2xf32>
    %c0_154 = arith.constant 0 : index
    %c0_155 = arith.constant 0 : index
    %158 = vector.load %arg5[%c0_154, %c0_155] : memref<1x2xf32, #tpu.memory_space<vmem>>, vector<1x2xf32>
    %159 = vector.broadcast %158 : vector<1x2xf32> to vector<16x2xf32>
    %160 = arith.addf %157, %159 : vector<16x2xf32>
    %161 = vector.extract_strided_slice %160 {offsets = [0, 0], sizes = [16, 1], strides = [1, 1]} : vector<16x2xf32> to vector<16x1xf32>
    %c0_156 = arith.constant 0 : index
    %c0_157 = arith.constant 0 : index
    %c0_158 = arith.constant 0 : index
    %162 = vector.load %arg6[%c0_156, %c0_157, %c0_158] : memref<1x16x2xf32, #tpu.memory_space<vmem>>, vector<1x16x1xf32>
    %163 = vector.shape_cast %162 : vector<1x16x1xf32> to vector<16x1xf32>
    %164 = vector.shape_cast %161 : vector<16x1xf32> to vector<1x16x1xf32>
    tpu.vector_store %arg6[%c0_156, %c0_157, %c0_158], %164 {strides = array<i32>} : memref<1x16x2xf32, #tpu.memory_space<vmem>>, vector<1x16x1xf32>,
    %165 = vector.extract_strided_slice %160 {offsets = [0, 1], sizes = [16, 1], strides = [1, 1]} : vector<16x2xf32> to vector<16x1xf32>
    %166 = arith.negf %165 : vector<16x1xf32>
    %167 = math.exp %166 : vector<16x1xf32>
    %cst_159 = arith.constant 1.000000e+00 : f32
    %168 = vector.broadcast %cst_159 : f32 to vector<16x1xf32>
    %169 = arith.addf %168, %167 : vector<16x1xf32>
    %170 = arith.divf %168, %169 : vector<16x1xf32>
    %c0_160 = arith.constant 0 : index
    %c0_161 = arith.constant 0 : index
    %c1_162 = arith.constant 1 : index
    %171 = vector.load %arg6[%c0_160, %c0_161, %c1_162] : memref<1x16x2xf32, #tpu.memory_space<vmem>>, vector<1x16x1xf32>
    %172 = vector.shape_cast %171 : vector<1x16x1xf32> to vector<16x1xf32>
    %173 = vector.shape_cast %170 : vector<16x1xf32> to vector<1x16x1xf32>
    tpu.vector_store %arg6[%c0_160, %c0_161, %c1_162], %173 {strides = array<i32>} : memref<1x16x2xf32, #tpu.memory_space<vmem>>, vector<1x16x1xf32>,
    return
  }
  func.func @transform_0(%arg0: i32) -> (i32, i32, i32) {
    %c0_i32 = arith.constant 0 : i32
    %c0_i32_0 = arith.constant 0 : i32
    %c0_i32_1 = arith.constant 0 : i32
    return %arg0, %c0_i32, %c0_i32_0 : i32, i32, i32
  }
  func.func @transform_1(%arg0: i32) -> (i32, i32, i32) {
    %c0_i32 = arith.constant 0 : i32
    %c0_i32_0 = arith.constant 0 : i32
    %c0_i32_1 = arith.constant 0 : i32
    %c0_i32_2 = arith.constant 0 : i32
    return %c0_i32, %c0_i32_0, %c0_i32_1 : i32, i32, i32
  }
  func.func @transform_2(%arg0: i32) -> (i32, i32, i32) {
    %c0_i32 = arith.constant 0 : i32
    %c0_i32_0 = arith.constant 0 : i32
    %c0_i32_1 = arith.constant 0 : i32
    %c0_i32_2 = arith.constant 0 : i32
    return %c0_i32, %c0_i32_0, %c0_i32_1 : i32, i32, i32
  }
  func.func @transform_3(%arg0: i32) -> (i32, i32, i32) {
    %c0_i32 = arith.constant 0 : i32
    %c0_i32_0 = arith.constant 0 : i32
    %c0_i32_1 = arith.constant 0 : i32
    %c0_i32_2 = arith.constant 0 : i32
    return %c0_i32, %c0_i32_0, %c0_i32_1 : i32, i32, i32
  }
  func.func @transform_4(%arg0: i32) -> (i32, i32) {
    %c0_i32 = arith.constant 0 : i32
    %c0_i32_0 = arith.constant 0 : i32
    %c0_i32_1 = arith.constant 0 : i32
    return %c0_i32, %c0_i32_0 : i32, i32
  }
  func.func @transform_5(%arg0: i32) -> (i32, i32, i32) {
    %c0_i32 = arith.constant 0 : i32
    %c0_i32_0 = arith.constant 0 : i32
    %c0_i32_1 = arith.constant 0 : i32
    return %arg0, %c0_i32, %c0_i32_0 : i32, i32, i32
  }
}

</mosaic_0001>

<llo_original>
// kernel: tpu_custom_call.1
$region0: #{tpu_custom_call.1}
  #allocation0 [shape = 'u32[]', space=smem, size = 0x4, offset = 0x4, fixed_abs, tag = 'smem constant byte address 0x4 - core index']
  #allocation1 [shape = 'u32[144,128]{1,0:T(1,128)}', space=vmem, size = 0x12000, scoped, tag = 'internal scratch']
  #allocation2 [shape = 'f32[20,32]{1,0:T(8,128)}', space=vmem, size = 0x3000, scoped, tag = 'scratch operand']
  #allocation3 [shape = 'f32[20,32]{1,0:T(8,128)}', space=vmem, size = 0x3000, scoped, tag = 'scratch operand']
  #allocation4 [shape = 'f32[16,32]{1,0:T(8,128)}', space=vmem, size = 0x2000, scoped, tag = 'scratch operand']
  %s0 = inlined_call_operand.hbm [shape: f32[2,16,32], index: 0, kind: input, shape index: {}]
  %s1 = inlined_call_operand.vmem [shape: bf16[5,32,32], index: 1, kind: input, shape index: {}]
  %s2 = inlined_call_operand.hbm [shape: bf16[5,32,32], index: 2, kind: input, shape index: {}]
  %s3 = inlined_call_operand.vmem [shape: bf16[5,32,2], index: 3, kind: input, shape index: {}]
  %s4 = inlined_call_operand.vmem [shape: f32[1,2], index: 4, kind: input, shape index: {}]
  %s5 = inlined_call_operand.vmem [shape: f32[2,16,2], index: 5, kind: output, shape index: {}]
  %s6 = sld [smem:[#allocation0]]
  $region61: #{tpu_custom_call.1} parent=0
    _
  %s8 = ssub.s32 1, %s6
  %s9 = scalar_select 0, %s8, %s6
  $region1: #{tpu_custom_call.1} parent=0
    #allocation5 [shape = 'u8[16384]{0}', space=vmem, size = 0x4000, scoped, tag = 'input window, operand 0']
    #allocation6 [shape = 's32[2]{0}', space=sflag, size = 0x8, scoped, tag = 'scoped memory for tpu_custom_call.1']
    #allocation7 [shape = 'u8[40960]{0}', space=vmem, size = 0xa000, scoped, tag = 'input window, operand 2, single buffered']
    #allocation8 [shape = 's32[1]{0}', space=sflag, size = 0x4, scoped, tag = 'scoped memory for tpu_custom_call.1']
    %10 = vsyncpa [#allocation6], 0
    %s11 = scalar_lea.sflag [#allocation6], 1
    %12 = vsyncpa %s11, 0
    %13 = vsyncpa [#allocation8], 0
    loop: start=0, step=1, limit=4
    $region2: #{tpu_custom_call.1} parent=1 // loop_pre_header
      _
    $region3: #{tpu_custom_call.1} parent=1 // loop_header
      %s15 = sphi 0, %s19
      %p16 = scmp.ge.s32.totalorder %s15, 4
      %s25 = sphi 0, %s27
      %s28 = sphi 0, %s25
      %s29 = sphi 0, %s28
      %s45 = sphi 0, %s29
      %s49 = sphi 0, %s49
      %s51 = sphi 0, %s49
      %s52 = sphi 0, %s51
      %s66 = sphi 0, %s52
      %s70 = sphi 0, %s70
      %s72 = sphi 0, %s70
      %s73 = sphi 0, %s72
      %s87 = sphi 0, %s73
      %s91 = sphi 0, %s91
      %s93 = sphi 0, %s91
      %s94 = sphi 0, %s93
      %s108 = sphi 0, %s94
      %s112 = sphi 0, %s112
      %s114 = sphi 0, %s112
      %s115 = sphi 0, %s114
      %s129 = sphi 0, %s115
      %s135 = sphi 0, %s137
      %s138 = sphi 0, %s135
      %s139 = sphi 0, %s138
      %s155 = sphi 0, %s139
    $region4: #{tpu_custom_call.1} parent=1 // loop_header_branch
      %18 = sbr.rel (%p16) target = $region8
    $region5: #{tpu_custom_call.1} parent=1 // loop_body
      %s20 = ssub.s32 %s15, 1
      %s21 = ssub.s32 %s15, 2
      %s22 = sadd.s32 %s15, 1
      %s23 = ssub.s32 %s15, %s22
      %p24 = scmp.eq.s32.totalorder %s23, 0
      %s26 = sadd.s32 %s25, 1
      %s27 = scalar_select %p24, %s25, %s26
      %p30 = pneg %p24
      %p31 = scmp.eq.s32.totalorder %s15, 1
      %p32 = por %p30, %p31
      %p33 = scmp.ne.s32.totalorder %s25, %s28
      %p34 = scmp.eq.s32.totalorder %s15, 0
      %p35 = por %p33, %p34
      %p36 = scmp.ne.s32.totalorder %s25, %s28
      %p37 = scmp.eq.s32.totalorder %s20, 1
      %p38 = por %p36, %p37
      %p39 = scmp.ne.s32.totalorder %s28, %s29
      %p40 = scmp.eq.s32.totalorder %s20, 0
      %p41 = por %p39, %p40
      %p42 = scmp.ne.s32.totalorder %s28, %s29
      %p43 = scmp.eq.s32.totalorder %s21, 1
      %p44 = por %p42, %p43
      %p46 = scmp.ne.s32.totalorder %s29, %s45
      %p47 = scmp.eq.s32.totalorder %s21, 0
      %p48 = por %p46, %p47
      %s50 = sadd.s32 %s49, 1
      %p53 = scmp.eq.s32.totalorder %s15, 1
      %p54 = scmp.ne.s32.totalorder %s49, %s51
      %p55 = scmp.eq.s32.totalorder %s15, 0
      %p56 = por %p54, %p55
      %p57 = scmp.ne.s32.totalorder %s49, %s51
      %p58 = scmp.eq.s32.totalorder %s20, 1
      %p59 = por %p57, %p58
      %p60 = scmp.ne.s32.totalorder %s51, %s52
      %p61 = scmp.eq.s32.totalorder %s20, 0
      %p62 = por %p60, %p61
      %p63 = scmp.ne.s32.totalorder %s51, %s52
      %p64 = scmp.eq.s32.totalorder %s21, 1
      %p65 = por %p63, %p64
      %p67 = scmp.ne.s32.totalorder %s52, %s66
      %p68 = scmp.eq.s32.totalorder %s21, 0
      %p69 = por %p67, %p68
      %s71 = sadd.s32 %s70, 1
      %p74 = scmp.eq.s32.totalorder %s15, 1
      %p75 = scmp.ne.s32.totalorder %s70, %s72
      %p76 = scmp.eq.s32.totalorder %s15, 0
      %p77 = por %p75, %p76
      %p78 = scmp.ne.s32.totalorder %s70, %s72
      %p79 = scmp.eq.s32.totalorder %s20, 1
      %p80 = por %p78, %p79
      %p81 = scmp.ne.s32.totalorder %s72, %s73
      %p82 = scmp.eq.s32.totalorder %s20, 0
      %p83 = por %p81, %p82
      %p84 = scmp.ne.s32.totalorder %s72, %s73
      %p85 = scmp.eq.s32.totalorder %s21, 1
      %p86 = por %p84, %p85
      %p88 = scmp.ne.s32.totalorder %s73, %s87
      %p89 = scmp.eq.s32.totalorder %s21, 0
      %p90 = por %p88, %p89
      %s92 = sadd.s32 %s91, 1
      %p95 = scmp.eq.s32.totalorder %s15, 1
      %p96 = scmp.ne.s32.totalorder %s91, %s93
      %p97 = scmp.eq.s32.totalorder %s15, 0
      %p98 = por %p96, %p97
      %p99 = scmp.ne.s32.totalorder %s91, %s93
      %p100 = scmp.eq.s32.totalorder %s20, 1
      %p101 = por %p99, %p100
      %p102 = scmp.ne.s32.totalorder %s93, %s94
      %p103 = scmp.eq.s32.totalorder %s20, 0
      %p104 = por %p102, %p103
      %p105 = scmp.ne.s32.totalorder %s93, %s94
      %p106 = scmp.eq.s32.totalorder %s21, 1
      %p107 = por %p105, %p106
      %p109 = scmp.ne.s32.totalorder %s94, %s108
      %p110 = scmp.eq.s32.totalorder %s21, 0
      %p111 = por %p109, %p110
      %s113 = sadd.s32 %s112, 1
      %p116 = scmp.eq.s32.totalorder %s15, 1
      %p117 = scmp.ne.s32.totalorder %s112, %s114
      %p118 = scmp.eq.s32.totalorder %s15, 0
      %p119 = por %p117, %p118
      %p120 = scmp.ne.s32.totalorder %s112, %s114
      %p121 = scmp.eq.s32.totalorder %s20, 1
      %p122 = por %p120, %p121
      %p123 = scmp.ne.s32.totalorder %s114, %s115
      %p124 = scmp.eq.s32.totalorder %s20, 0
      %p125 = por %p123, %p124
      %p126 = scmp.ne.s32.totalorder %s114, %s115
      %p127 = scmp.eq.s32.totalorder %s21, 1
      %p128 = por %p126, %p127
      %p130 = scmp.ne.s32.totalorder %s115, %s129
      %p131 = scmp.eq.s32.totalorder %s21, 0
      %p132 = por %p130, %p131
      %s133 = ssub.s32 %s15, %s22
      %p134 = scmp.eq.s32.totalorder %s133, 0
      %s136 = sadd.s32 %s135, 1
      %s137 = scalar_select %p134, %s135, %s136
      %p140 = pneg %p134
      %p141 = scmp.eq.s32.totalorder %s15, 1
      %p142 = por %p140, %p141
      %p143 = scmp.ne.s32.totalorder %s135, %s138
      %p144 = scmp.eq.s32.totalorder %s15, 0
      %p145 = por %p143, %p144
      %p146 = scmp.ne.s32.totalorder %s135, %s138
      %p147 = scmp.eq.s32.totalorder %s20, 1
      %p148 = por %p146, %p147
      %p149 = scmp.ne.s32.totalorder %s138, %s139
      %p150 = scmp.eq.s32.totalorder %s20, 0
      %p151 = por %p149, %p150
      %p152 = scmp.ne.s32.totalorder %s138, %s139
      %p153 = scmp.eq.s32.totalorder %s21, 1
      %p154 = por %p152, %p153
      %p156 = scmp.ne.s32.totalorder %s139, %s155
      %p157 = scmp.eq.s32.totalorder %s21, 0
      %p158 = por %p156, %p157
      %p159 = scmp.le.s32.totalorder 1, %s15
      %p160 = scmp.lt.s32.totalorder %s15, 3
      %p161 = pnand %p159, %p160
      %p162 = pneg %p161
      // Predicated region
      $region9: #{tpu_custom_call.1} parent=5 // pred_check
        _
      $region10: #{tpu_custom_call.1} parent=5 // pred_check_branch
        %164 = sbr.rel (%p161) target = $region12
      $region11: #{tpu_custom_call.1} parent=5 // pred_region
        %s165 = ssub.s32 %s15, 1
        // Predicated region
        $region13: #{tpu_custom_call.1} parent=11 // pred_check
          %p166 = pneg %p62
        $region14: #{tpu_custom_call.1} parent=11 // pred_check_branch
          %168 = sbr.rel (%p166) target = $region16
        $region15: #{tpu_custom_call.1} parent=11 // pred_region
          _
        $region16: #{tpu_custom_call.1} parent=11 // pred_fallthru
          _
        // Predicated region
        $region17: #{tpu_custom_call.1} parent=11 // pred_check
          %p169 = pneg %p83
        $region18: #{tpu_custom_call.1} parent=11 // pred_check_branch
          %171 = sbr.rel (%p169) target = $region20
        $region19: #{tpu_custom_call.1} parent=11 // pred_region
          %s173 = ssub.s32 1280, 1280
          %174 = vsyncadd [#allocation8], %s173
          %s175 = sshll.u32 [#allocation7], 4
          %s176 = int_to_ptr.vmem [resolvable:$true] %s175
          %181 = dma.hbm_to_vmem [thread:$0]  %s2, 1280, %s176, [#allocation8], 64, 64, 4
        $region20: #{tpu_custom_call.1} parent=11 // pred_fallthru
          _
        // Predicated region
        $region21: #{tpu_custom_call.1} parent=11 // pred_check
          %p182 = pneg %p104
        $region22: #{tpu_custom_call.1} parent=11 // pred_check_branch
          %184 = sbr.rel (%p182) target = $region24
        $region23: #{tpu_custom_call.1} parent=11 // pred_region
          _
        $region24: #{tpu_custom_call.1} parent=11 // pred_fallthru
          _
        // Predicated region
        $region25: #{tpu_custom_call.1} parent=11 // pred_check
          %p185 = pneg %p125
        $region26: #{tpu_custom_call.1} parent=11 // pred_check_branch
          %187 = sbr.rel (%p185) target = $region28
        $region27: #{tpu_custom_call.1} parent=11 // pred_region
          _
        $region28: #{tpu_custom_call.1} parent=11 // pred_fallthru
          _
      $region12: #{tpu_custom_call.1} parent=5 // pred_fallthru
        _
      %p188 = scmp.lt.s32.totalorder %s15, 2
      // Predicated region
      $region29: #{tpu_custom_call.1} parent=5 // pred_check
        %p189 = pneg %p188
      $region30: #{tpu_custom_call.1} parent=5 // pred_check_branch
        %191 = sbr.rel (%p189) target = $region32
      $region31: #{tpu_custom_call.1} parent=5 // pred_region
        // Predicated region
        $region33: #{tpu_custom_call.1} parent=31 // pred_check
          %p192 = pneg %p35
        $region34: #{tpu_custom_call.1} parent=31 // pred_check_branch
          %194 = sbr.rel (%p192) target = $region36
        $region35: #{tpu_custom_call.1} parent=31 // pred_region
          %s195 = sand.u32 %s25, 1
          %s196 = scalar_lea.sflag [#allocation6], %s195
          %s197 = sand.u32 %s25, 1
          %s198 = smul.addr %s197, 16
          %s199 = scalar_lea.vmem [#allocation5], %s198
          %s201 = ssub.s32 256, 256
          %202 = vsyncadd %s196, %s201
          %s203 = smul.addr %s15, 2
          %s204 = smul.addr %s203, 128
          %s205 = scalar_lea.hbm %s0, %s204
          %s206 = sshll.u32 %s199, 4
          %s207 = int_to_ptr.vmem [resolvable:$true] %s206
          %212 = dma.hbm_to_vmem [thread:$0]  %s205, 256, %s207, %s196, 128, 128, 8
        $region36: #{tpu_custom_call.1} parent=31 // pred_fallthru
          _
      $region32: #{tpu_custom_call.1} parent=5 // pred_fallthru
        _
      %p213 = scmp.le.s32.totalorder 1, %s15
      %p214 = scmp.lt.s32.totalorder %s15, 3
      %p215 = pnand %p213, %p214
      %p216 = pneg %p215
      // Predicated region
      $region37: #{tpu_custom_call.1} parent=5 // pred_check
        _
      $region38: #{tpu_custom_call.1} parent=5 // pred_check_branch
        %218 = sbr.rel (%p215) target = $region40
      $region39: #{tpu_custom_call.1} parent=5 // pred_region
        %s219 = ssub.s32 %s15, 1
        %s220 = sand.u32 %s28, 1
        %s221 = scalar_lea.sflag [#allocation6], %s220
        %s222 = sand.u32 %s28, 1
        %s223 = smul.addr %s222, 16
        %s224 = scalar_lea.vmem [#allocation5], %s223
        // Predicated region
        $region41: #{tpu_custom_call.1} parent=39 // pred_check
          %p225 = pneg %p41
        $region42: #{tpu_custom_call.1} parent=39 // pred_check_branch
          %227 = sbr.rel (%p225) target = $region44
        $region43: #{tpu_custom_call.1} parent=39 // pred_region
          %228 = dma.done %s221, 256
        $region44: #{tpu_custom_call.1} parent=39 // pred_fallthru
          _
        // Predicated region
        $region45: #{tpu_custom_call.1} parent=39 // pred_check
          %p229 = pneg %p83
        $region46: #{tpu_custom_call.1} parent=39 // pred_check_branch
          %231 = sbr.rel (%p229) target = $region48
        $region47: #{tpu_custom_call.1} parent=39 // pred_region
          %232 = dma.done [#allocation8], 1280
        $region48: #{tpu_custom_call.1} parent=39 // pred_fallthru
          _
        %s233 = sand.u32 %s28, 1
        %s234 = scalar_lea.sflag [#allocation6], %s233
        %s235 = sand.u32 %s28, 1
        %s236 = smul.addr %s235, 16
        %s237 = scalar_lea.vmem [#allocation5], %s236
        %p238 = pneg %p41
        %p239 = pneg %p38
        %p240 = pneg %p62
        %p241 = pneg %p59
        %p242 = pneg %p83
        %p243 = pneg %p80
        %p244 = pneg %p104
        %p245 = pneg %p101
        %p246 = pneg %p125
        %p247 = pneg %p122
        %p248 = pneg %p151
        %p249 = pneg %p148
        %p250 = scmp.lt.s32.totalorder %s20, 1
        %s251 = scalar_select %p250, %s20, 1
        %s252 = smul.addr %s251, 2
        %s253 = smul.addr %s252, 8
        %s254 = scalar_lea.vmem %s5, %s253
        %p255 = scmp.lt.s32.totalorder %s20, 1
        %s256 = scalar_select %p255, %s20, 1
        %s257 = smul.addr %s256, 2
        %s258 = smul.addr %s257, 8
        %s259 = scalar_lea.vmem %s5, %s258
        %v261 = vld [vmem:[%s224] sm:$0xff]
        %v262 = vld [vmem:[%s224 + $0x8] sm:$0xff]
        %vm263 = vcmask 254976
        %264 = vst.msk [vmem:[#allocation2] sm:$0x3] %vm263, 0.0
        %265 = vst.msk [vmem:[#allocation2 + $0x12] sm:$0x3] %vm263, 0.0
        %vm266 = vcmask 261120
        %267 = vst.msk [vmem:[#allocation2 + $0x2] sm:$0xff] %vm266, %v261
        %268 = vst.msk [vmem:[#allocation2 + $0xa] sm:$0xff] %vm266, %v262
        %v269 = vld [vmem:[#allocation2] sm:$0xff]
        %v270 = vld [vmem:[#allocation2 + $0x8] sm:$0xff]
        %v271 = vpack.c.bf16 %v270, %v269
        %v272 = vld [vmem:[%s1] sm:$0xf]
        %v273 = vld [vmem:[%s1 + $0x4] sm:$0xf]
        %v274 = vld [vmem:[%s1 + $0x8] sm:$0xf]
        %v275 = vld [vmem:[%s1 + $0xc] sm:$0xf]
        %v280 = vunpack.c.l.b16 %v272
        %v281 = vunpack.c.l.b16 %v273
        %v282 = vunpack.c.l.b16 %v274
        %v283 = vunpack.c.l.b16 %v275
        %v284 = vpack.c.b16 %v281, %v280
        %v285 = vpack.c.b16 %v283, %v282
        %v289 = vsel %vm266, %v271, 0
        %291 = vmatprep.subr.bf16.mxu0 0
        %292 = vmatpush1.bf16.msra.mxu0 %v284
        %293 = vmatprep.subr.bf16.mxu0 0
        %294 = vmatpush1.bf16.msra.mxu0 %v285
        %295 = vmatprep.subr.bf16.mxu0 0
        %296 = vmatpush1.bf16.msra.mxu0 0
        %297 = vmatprep.subr.bf16.mxu0 0
        %298 = vmatpush1.bf16.msra.mxu0 0
        %299 = vmatprep.subr.bf16.mxu0 0
        %300 = vmatpush1.bf16.msra.mxu0 0
        %301 = vmatprep.subr.bf16.mxu0 0
        %302 = vmatpush1.bf16.msra.mxu0 0
        %303 = vmatprep.subr.bf16.mxu0 0
        %304 = vmatpush1.bf16.msra.mxu0 0
        %305 = vmatprep.subr.bf16.mxu0 0
        %306 = vmatpush1.bf16.msra.mxu0 0
        %307 = vmatprep.subr.bf16.mxu0 0
        %308 = vmatpush1.bf16.msra.mxu0 0
        %309 = vmatprep.subr.bf16.mxu0 0
        %310 = vmatpush1.bf16.msra.mxu0 0
        %311 = vmatprep.subr.bf16.mxu0 0
        %312 = vmatpush1.bf16.msra.mxu0 0
        %313 = vmatprep.subr.bf16.mxu0 0
        %314 = vmatpush1.bf16.msra.mxu0 0
        %315 = vmatprep.subr.bf16.mxu0 0
        %316 = vmatpush1.bf16.msra.mxu0 0
        %317 = vmatprep.subr.bf16.mxu0 0
        %318 = vmatpush1.bf16.msra.mxu0 0
        %319 = vmatprep.subr.bf16.mxu0 0
        %320 = vmatpush1.bf16.msra.mxu0 0
        %321 = vmatprep.subr.bf16.mxu0 0
        %322 = vmatpush1.bf16.msra.mxu0 0
        %323 = vmatprep.mubr.bf16.mxu0 0
        %324 = vmatmul.mubr.bf16.gmra.mrb[0].mxu0 %v289
        %v325 = vpop.f32.mrb[0].mxu0
        %v326 = vadd.f32 0.0, %v325
        %v327 = vpop.f32.mrb[0].mxu0
        %v328 = vpop.f32.mrb[0].mxu0
        %v329 = vadd.f32 0.0, %v328
        %v330 = vpop.f32.mrb[0].mxu0
        %331 = vdwg.mxu0
        %332 = vst.msk [vmem:[#allocation4] sm:$0xff] %vm266, %v326
        %333 = vst.msk [vmem:[#allocation4 + $0x8] sm:$0xff] %vm266, %v329
        %v334 = vld [vmem:[#allocation4] sm:$0xff]
        %v335 = vld [vmem:[#allocation4 + $0x8] sm:$0xff]
        %v336 = vld [vmem:[#allocation2 + $0x1] sm:$0xff]
        %v337 = vld [vmem:[#allocation2 + $0x9] sm:$0xff]
        %v338 = vpack.c.bf16 %v337, %v336
        %s339 = scalar_lea.vmem %s1, 16
        %v340 = vld [vmem:[%s339] sm:$0xf]
        %v341 = vld [vmem:[%s339 + $0x4] sm:$0xf]
        %v342 = vld [vmem:[%s339 + $0x8] sm:$0xf]
        %v343 = vld [vmem:[%s339 + $0xc] sm:$0xf]
        %v348 = vunpack.c.l.b16 %v340
        %v349 = vunpack.c.l.b16 %v341
        %v350 = vunpack.c.l.b16 %v342
        %v351 = vunpack.c.l.b16 %v343
        %v352 = vpack.c.b16 %v349, %v348
        %v353 = vpack.c.b16 %v351, %v350
        %v357 = vsel %vm266, %v338, 0
        %359 = vmatprep.subr.bf16.mxu0 0
        %360 = vmatpush1.bf16.msra.mxu0 %v352
        %361 = vmatprep.subr.bf16.mxu0 0
        %362 = vmatpush1.bf16.msra.mxu0 %v353
        %363 = vmatprep.subr.bf16.mxu0 0
        %364 = vmatpush1.bf16.msra.mxu0 0
        %365 = vmatprep.subr.bf16.mxu0 0
        %366 = vmatpush1.bf16.msra.mxu0 0
        %367 = vmatprep.subr.bf16.mxu0 0
        %368 = vmatpush1.bf16.msra.mxu0 0
        %369 = vmatprep.subr.bf16.mxu0 0
        %370 = vmatpush1.bf16.msra.mxu0 0
        %371 = vmatprep.subr.bf16.mxu0 0
        %372 = vmatpush1.bf16.msra.mxu0 0
        %373 = vmatprep.subr.bf16.mxu0 0
        %374 = vmatpush1.bf16.msra.mxu0 0
        %375 = vmatprep.subr.bf16.mxu0 0
        %376 = vmatpush1.bf16.msra.mxu0 0
        %377 = vmatprep.subr.bf16.mxu0 0
        %378 = vmatpush1.bf16.msra.mxu0 0
        %379 = vmatprep.subr.bf16.mxu0 0
        %380 = vmatpush1.bf16.msra.mxu0 0
        %381 = vmatprep.subr.bf16.mxu0 0
        %382 = vmatpush1.bf16.msra.mxu0 0
        %383 = vmatprep.subr.bf16.mxu0 0
        %384 = vmatpush1.bf16.msra.mxu0 0
        %385 = vmatprep.subr.bf16.mxu0 0
        %386 = vmatpush1.bf16.msra.mxu0 0
        %387 = vmatprep.subr.bf16.mxu0 0
        %388 = vmatpush1.bf16.msra.mxu0 0
        %389 = vmatprep.subr.bf16.mxu0 0
        %390 = vmatpush1.bf16.msra.mxu0 0
        %391 = vmatprep.mubr.bf16.mxu0 0
        %392 = vmatmul.mubr.bf16.gmra.mrb[0].mxu0 %v357
        %v393 = vpop.f32.mrb[0].mxu0
        %v394 = vadd.f32 0.0, %v393
        %v395 = vpop.f32.mrb[0].mxu0
        %v396 = vpop.f32.mrb[0].mxu0
        %v397 = vadd.f32 0.0, %v396
        %v398 = vpop.f32.mrb[0].mxu0
        %399 = vdwg.mxu0
        %v400 = vadd.f32 %v334, %v394
        %v401 = vadd.f32 %v335, %v397
        %402 = vst.msk [vmem:[#allocation4] sm:$0xff] %vm266, %v400
        %403 = vst.msk [vmem:[#allocation4 + $0x8] sm:$0xff] %vm266, %v401
        %v404 = vld [vmem:[#allocation4] sm:$0xff]
        %v405 = vld [vmem:[#allocation4 + $0x8] sm:$0xff]
        %v406 = vld [vmem:[#allocation2 + $0x2] sm:$0xff]
        %v407 = vld [vmem:[#allocation2 + $0xa] sm:$0xff]
        %v408 = vpack.c.bf16 %v407, %v406
        %s409 = scalar_lea.vmem %s1, 32
        %v410 = vld [vmem:[%s409] sm:$0xf]
        %v411 = vld [vmem:[%s409 + $0x4] sm:$0xf]
        %v412 = vld [vmem:[%s409 + $0x8] sm:$0xf]
        %v413 = vld [vmem:[%s409 + $0xc] sm:$0xf]
        %v418 = vunpack.c.l.b16 %v410
        %v419 = vunpack.c.l.b16 %v411
        %v420 = vunpack.c.l.b16 %v412
        %v421 = vunpack.c.l.b16 %v413
        %v422 = vpack.c.b16 %v419, %v418
        %v423 = vpack.c.b16 %v421, %v420
        %v427 = vsel %vm266, %v408, 0
        %429 = vmatprep.subr.bf16.mxu0 0
        %430 = vmatpush1.bf16.msra.mxu0 %v422
        %431 = vmatprep.subr.bf16.mxu0 0
        %432 = vmatpush1.bf16.msra.mxu0 %v423
        %433 = vmatprep.subr.bf16.mxu0 0
        %434 = vmatpush1.bf16.msra.mxu0 0
        %435 = vmatprep.subr.bf16.mxu0 0
        %436 = vmatpush1.bf16.msra.mxu0 0
        %437 = vmatprep.subr.bf16.mxu0 0
        %438 = vmatpush1.bf16.msra.mxu0 0
        %439 = vmatprep.subr.bf16.mxu0 0
        %440 = vmatpush1.bf16.msra.mxu0 0
        %441 = vmatprep.subr.bf16.mxu0 0
        %442 = vmatpush1.bf16.msra.mxu0 0
        %443 = vmatprep.subr.bf16.mxu0 0
        %444 = vmatpush1.bf16.msra.mxu0 0
        %445 = vmatprep.subr.bf16.mxu0 0
        %446 = vmatpush1.bf16.msra.mxu0 0
        %447 = vmatprep.subr.bf16.mxu0 0
        %448 = vmatpush1.bf16.msra.mxu0 0
        %449 = vmatprep.subr.bf16.mxu0 0
        %450 = vmatpush1.bf16.msra.mxu0 0
        %451 = vmatprep.subr.bf16.mxu0 0
        %452 = vmatpush1.bf16.msra.mxu0 0
        %453 = vmatprep.subr.bf16.mxu0 0
        %454 = vmatpush1.bf16.msra.mxu0 0
        %455 = vmatprep.subr.bf16.mxu0 0
        %456 = vmatpush1.bf16.msra.mxu0 0
        %457 = vmatprep.subr.bf16.mxu0 0
        %458 = vmatpush1.bf16.msra.mxu0 0
        %459 = vmatprep.subr.bf16.mxu0 0
        %460 = vmatpush1.bf16.msra.mxu0 0
        %461 = vmatprep.mubr.bf16.mxu0 0
        %462 = vmatmul.mubr.bf16.gmra.mrb[0].mxu0 %v427
        %v463 = vpop.f32.mrb[0].mxu0
        %v464 = vadd.f32 0.0, %v463
        %v465 = vpop.f32.mrb[0].mxu0
        %v466 = vpop.f32.mrb[0].mxu0
        %v467 = vadd.f32 0.0, %v466
        %v468 = vpop.f32.mrb[0].mxu0
        %469 = vdwg.mxu0
        %v470 = vadd.f32 %v404, %v464
        %v471 = vadd.f32 %v405, %v467
        %472 = vst.msk [vmem:[#allocation4] sm:$0xff] %vm266, %v470
        %473 = vst.msk [vmem:[#allocation4 + $0x8] sm:$0xff] %vm266, %v471
        %v474 = vld [vmem:[#allocation4] sm:$0xff]
        %v475 = vld [vmem:[#allocation4 + $0x8] sm:$0xff]
        %v476 = vld [vmem:[#allocation2 + $0x3] sm:$0xff]
        %v477 = vld [vmem:[#allocation2 + $0xb] sm:$0xff]
        %v478 = vpack.c.bf16 %v477, %v476
        %s479 = scalar_lea.vmem %s1, 48
        %v480 = vld [vmem:[%s479] sm:$0xf]
        %v481 = vld [vmem:[%s479 + $0x4] sm:$0xf]
        %v482 = vld [vmem:[%s479 + $0x8] sm:$0xf]
        %v483 = vld [vmem:[%s479 + $0xc] sm:$0xf]
        %v488 = vunpack.c.l.b16 %v480
        %v489 = vunpack.c.l.b16 %v481
        %v490 = vunpack.c.l.b16 %v482
        %v491 = vunpack.c.l.b16 %v483
        %v492 = vpack.c.b16 %v489, %v488
        %v493 = vpack.c.b16 %v491, %v490
        %v497 = vsel %vm266, %v478, 0
        %499 = vmatprep.subr.bf16.mxu0 0
        %500 = vmatpush1.bf16.msra.mxu0 %v492
        %501 = vmatprep.subr.bf16.mxu0 0
        %502 = vmatpush1.bf16.msra.mxu0 %v493
        %503 = vmatprep.subr.bf16.mxu0 0
        %504 = vmatpush1.bf16.msra.mxu0 0
        %505 = vmatprep.subr.bf16.mxu0 0
        %506 = vmatpush1.bf16.msra.mxu0 0
        %507 = vmatprep.subr.bf16.mxu0 0
        %508 = vmatpush1.bf16.msra.mxu0 0
        %509 = vmatprep.subr.bf16.mxu0 0
        %510 = vmatpush1.bf16.msra.mxu0 0
        %511 = vmatprep.subr.bf16.mxu0 0
        %512 = vmatpush1.bf16.msra.mxu0 0
        %513 = vmatprep.subr.bf16.mxu0 0
        %514 = vmatpush1.bf16.msra.mxu0 0
        %515 = vmatprep.subr.bf16.mxu0 0
        %516 = vmatpush1.bf16.msra.mxu0 0
        %517 = vmatprep.subr.bf16.mxu0 0
        %518 = vmatpush1.bf16.msra.mxu0 0
        %519 = vmatprep.subr.bf16.mxu0 0
        %520 = vmatpush1.bf16.msra.mxu0 0
        %521 = vmatprep.subr.bf16.mxu0 0
        %522 = vmatpush1.bf16.msra.mxu0 0
        %523 = vmatprep.subr.bf16.mxu0 0
        %524 = vmatpush1.bf16.msra.mxu0 0
        %525 = vmatprep.subr.bf16.mxu0 0
        %526 = vmatpush1.bf16.msra.mxu0 0
        %527 = vmatprep.subr.bf16.mxu0 0
        %528 = vmatpush1.bf16.msra.mxu0 0
        %529 = vmatprep.subr.bf16.mxu0 0
        %530 = vmatpush1.bf16.msra.mxu0 0
        %531 = vmatprep.mubr.bf16.mxu0 0
        %532 = vmatmul.mubr.bf16.gmra.mrb[0].mxu0 %v497
        %v533 = vpop.f32.mrb[0].mxu0
        %v534 = vadd.f32 0.0, %v533
        %v535 = vpop.f32.mrb[0].mxu0
        %v536 = vpop.f32.mrb[0].mxu0
        %v537 = vadd.f32 0.0, %v536
        %v538 = vpop.f32.mrb[0].mxu0
        %539 = vdwg.mxu0
        %v540 = vadd.f32 %v474, %v534
        %v541 = vadd.f32 %v475, %v537
        %542 = vst.msk [vmem:[#allocation4] sm:$0xff] %vm266, %v540
        %543 = vst.msk [vmem:[#allocation4 + $0x8] sm:$0xff] %vm266, %v541
        %v544 = vld [vmem:[#allocation4] sm:$0xff]
        %v545 = vld [vmem:[#allocation4 + $0x8] sm:$0xff]
        %v546 = vld [vmem:[#allocation2 + $0x4] sm:$0xff]
        %v547 = vld [vmem:[#allocation2 + $0xc] sm:$0xff]
        %v548 = vpack.c.bf16 %v547, %v546
        %s549 = scalar_lea.vmem %s1, 64
        %v550 = vld [vmem:[%s549] sm:$0xf]
        %v551 = vld [vmem:[%s549 + $0x4] sm:$0xf]
        %v552 = vld [vmem:[%s549 + $0x8] sm:$0xf]
        %v553 = vld [vmem:[%s549 + $0xc] sm:$0xf]
        %v558 = vunpack.c.l.b16 %v550
        %v559 = vunpack.c.l.b16 %v551
        %v560 = vunpack.c.l.b16 %v552
        %v561 = vunpack.c.l.b16 %v553
        %v562 = vpack.c.b16 %v559, %v558
        %v563 = vpack.c.b16 %v561, %v560
        %v567 = vsel %vm266, %v548, 0
        %569 = vmatprep.subr.bf16.mxu0 0
        %570 = vmatpush1.bf16.msra.mxu0 %v562
        %571 = vmatprep.subr.bf16.mxu0 0
        %572 = vmatpush1.bf16.msra.mxu0 %v563
        %573 = vmatprep.subr.bf16.mxu0 0
        %574 = vmatpush1.bf16.msra.mxu0 0
        %575 = vmatprep.subr.bf16.mxu0 0
        %576 = vmatpush1.bf16.msra.mxu0 0
        %577 = vmatprep.subr.bf16.mxu0 0
        %578 = vmatpush1.bf16.msra.mxu0 0
        %579 = vmatprep.subr.bf16.mxu0 0
        %580 = vmatpush1.bf16.msra.mxu0 0
        %581 = vmatprep.subr.bf16.mxu0 0
        %582 = vmatpush1.bf16.msra.mxu0 0
        %583 = vmatprep.subr.bf16.mxu0 0
        %584 = vmatpush1.bf16.msra.mxu0 0
        %585 = vmatprep.subr.bf16.mxu0 0
        %586 = vmatpush1.bf16.msra.mxu0 0
        %587 = vmatprep.subr.bf16.mxu0 0
        %588 = vmatpush1.bf16.msra.mxu0 0
        %589 = vmatprep.subr.bf16.mxu0 0
        %590 = vmatpush1.bf16.msra.mxu0 0
        %591 = vmatprep.subr.bf16.mxu0 0
        %592 = vmatpush1.bf16.msra.mxu0 0
        %593 = vmatprep.subr.bf16.mxu0 0
        %594 = vmatpush1.bf16.msra.mxu0 0
        %595 = vmatprep.subr.bf16.mxu0 0
        %596 = vmatpush1.bf16.msra.mxu0 0
        %597 = vmatprep.subr.bf16.mxu0 0
        %598 = vmatpush1.bf16.msra.mxu0 0
        %599 = vmatprep.subr.bf16.mxu0 0
        %600 = vmatpush1.bf16.msra.mxu0 0
        %601 = vmatprep.mubr.bf16.mxu0 0
        %602 = vmatmul.mubr.bf16.gmra.mrb[0].mxu0 %v567
        %v603 = vpop.f32.mrb[0].mxu0
        %v604 = vadd.f32 0.0, %v603
        %v605 = vpop.f32.mrb[0].mxu0
        %v606 = vpop.f32.mrb[0].mxu0
        %v607 = vadd.f32 0.0, %v606
        %v608 = vpop.f32.mrb[0].mxu0
        %609 = vdwg.mxu0
        %v610 = vadd.f32 %v544, %v604
        %v611 = vadd.f32 %v545, %v607
        %612 = vst.msk [vmem:[#allocation4] sm:$0xff] %vm266, %v610
        %613 = vst.msk [vmem:[#allocation4 + $0x8] sm:$0xff] %vm266, %v611
        %v614 = vld [vmem:[#allocation4] sm:$0xff]
        %v615 = vld [vmem:[#allocation4 + $0x8] sm:$0xff]
        %v616 = vsel %vm266, %v614, 0.0
        %v617 = vsel %vm266, %v615, 0.0
        %v618 = vadd.f32 %v616, %v617
        %v619 = vrot.slane %v618, 4
        %v620 = vadd.f32 %v618, %v619
        %v621 = vrot.slane %v620, 2
        %v622 = vadd.f32 %v620, %v621
        %v623 = vrot.slane %v622, 1
        %v624 = vadd.f32 %v622, %v623
        %v625 = vmul.f32 %v624, 0.0625
        %v626 = vmul.f32 %v614, %v614
        %v627 = vmul.f32 %v615, %v615
        %v628 = vsel %vm266, %v626, 0.0
        %v629 = vsel %vm266, %v627, 0.0
        %v630 = vadd.f32 %v628, %v629
        %v631 = vrot.slane %v630, 4
        %v632 = vadd.f32 %v630, %v631
        %v633 = vrot.slane %v632, 2
        %v634 = vadd.f32 %v632, %v633
        %v635 = vrot.slane %v634, 1
        %v636 = vadd.f32 %v634, %v635
        %v637 = vmul.f32 %v636, 0.0625
        %v638 = vmul.f32 %v625, %v625
        %v639 = vsub.f32 %v637, %v638
        %v640 = vsub.f32 %v614, %v625
        %v641 = vsub.f32 %v615, %v625
        %v642 = vadd.f32 %v639, 1e-05
        %v643 = vrsqrt.pop %v642
        %v644 = vmul.f32 %v640, %v643
        %v645 = vmul.f32 %v641, %v643
        %v646 = vmax.f32 %v644, 0.0
        %v647 = vmax.f32 %v645, 0.0
        %648 = vst.msk [vmem:[#allocation3] sm:$0x3] %vm263, 0.0
        %649 = vst.msk [vmem:[#allocation3 + $0x12] sm:$0x3] %vm263, 0.0
        %650 = vst.msk [vmem:[#allocation3 + $0x2] sm:$0xff] %vm266, %v646
        %651 = vst.msk [vmem:[#allocation3 + $0xa] sm:$0xff] %vm266, %v647
        %v652 = vld [vmem:[#allocation3] sm:$0xff]
        %v653 = vld [vmem:[#allocation3 + $0x8] sm:$0xff]
        %v654 = vpack.c.bf16 %v653, %v652
        %v655 = vld [vmem:[#allocation7] sm:$0xf]
        %v656 = vld [vmem:[#allocation7 + $0x4] sm:$0xf]
        %v657 = vld [vmem:[#allocation7 + $0x8] sm:$0xf]
        %v658 = vld [vmem:[#allocation7 + $0xc] sm:$0xf]
        %v663 = vunpack.c.l.b16 %v655
        %v664 = vunpack.c.l.b16 %v656
        %v665 = vunpack.c.l.b16 %v657
        %v666 = vunpack.c.l.b16 %v658
        %v667 = vpack.c.b16 %v664, %v663
        %v668 = vpack.c.b16 %v666, %v665
        %v672 = vsel %vm266, %v654, 0
        %674 = vmatprep.subr.bf16.mxu0 0
        %675 = vmatpush1.bf16.msra.mxu0 %v667
        %676 = vmatprep.subr.bf16.mxu0 0
        %677 = vmatpush1.bf16.msra.mxu0 %v668
        %678 = vmatprep.subr.bf16.mxu0 0
        %679 = vmatpush1.bf16.msra.mxu0 0
        %680 = vmatprep.subr.bf16.mxu0 0
        %681 = vmatpush1.bf16.msra.mxu0 0
        %682 = vmatprep.subr.bf16.mxu0 0
        %683 = vmatpush1.bf16.msra.mxu0 0
        %684 = vmatprep.subr.bf16.mxu0 0
        %685 = vmatpush1.bf16.msra.mxu0 0
        %686 = vmatprep.subr.bf16.mxu0 0
        %687 = vmatpush1.bf16.msra.mxu0 0
        %688 = vmatprep.subr.bf16.mxu0 0
        %689 = vmatpush1.bf16.msra.mxu0 0
        %690 = vmatprep.subr.bf16.mxu0 0
        %691 = vmatpush1.bf16.msra.mxu0 0
        %692 = vmatprep.subr.bf16.mxu0 0
        %693 = vmatpush1.bf16.msra.mxu0 0
        %694 = vmatprep.subr.bf16.mxu0 0
        %695 = vmatpush1.bf16.msra.mxu0 0
        %696 = vmatprep.subr.bf16.mxu0 0
        %697 = vmatpush1.bf16.msra.mxu0 0
        %698 = vmatprep.subr.bf16.mxu0 0
        %699 = vmatpush1.bf16.msra.mxu0 0
        %700 = vmatprep.subr.bf16.mxu0 0
        %701 = vmatpush1.bf16.msra.mxu0 0
        %702 = vmatprep.subr.bf16.mxu0 0
        %703 = vmatpush1.bf16.msra.mxu0 0
        %704 = vmatprep.subr.bf16.mxu0 0
        %705 = vmatpush1.bf16.msra.mxu0 0
        %706 = vmatprep.mubr.bf16.mxu0 0
        %707 = vmatmul.mubr.bf16.gmra.mrb[0].mxu0 %v672
        %v708 = vpop.f32.mrb[0].mxu0
        %v709 = vadd.f32 0.0, %v708
        %v710 = vpop.f32.mrb[0].mxu0
        %v711 = vpop.f32.mrb[0].mxu0
        %v712 = vadd.f32 0.0, %v711
        %v713 = vpop.f32.mrb[0].mxu0
        %714 = vdwg.mxu0
        %715 = vst.msk [vmem:[#allocation4] sm:$0xff] %vm266, %v709
        %716 = vst.msk [vmem:[#allocation4 + $0x8] sm:$0xff] %vm266, %v712
        %v717 = vld [vmem:[#allocation4] sm:$0xff]
        %v718 = vld [vmem:[#allocation4 + $0x8] sm:$0xff]
        %v719 = vld [vmem:[#allocation3 + $0x1] sm:$0xff]
        %v720 = vld [vmem:[#allocation3 + $0x9] sm:$0xff]
        %v721 = vpack.c.bf16 %v720, %v719
        %s722 = scalar_lea.vmem [#allocation7], 16
        %v723 = vld [vmem:[%s722] sm:$0xf]
        %v724 = vld [vmem:[%s722 + $0x4] sm:$0xf]
        %v725 = vld [vmem:[%s722 + $0x8] sm:$0xf]
        %v726 = vld [vmem:[%s722 + $0xc] sm:$0xf]
        %v731 = vunpack.c.l.b16 %v723
        %v732 = vunpack.c.l.b16 %v724
        %v733 = vunpack.c.l.b16 %v725
        %v734 = vunpack.c.l.b16 %v726
        %v735 = vpack.c.b16 %v732, %v731
        %v736 = vpack.c.b16 %v734, %v733
        %v740 = vsel %vm266, %v721, 0
        %742 = vmatprep.subr.bf16.mxu0 0
        %743 = vmatpush1.bf16.msra.mxu0 %v735
        %744 = vmatprep.subr.bf16.mxu0 0
        %745 = vmatpush1.bf16.msra.mxu0 %v736
        %746 = vmatprep.subr.bf16.mxu0 0
        %747 = vmatpush1.bf16.msra.mxu0 0
        %748 = vmatprep.subr.bf16.mxu0 0
        %749 = vmatpush1.bf16.msra.mxu0 0
        %750 = vmatprep.subr.bf16.mxu0 0
        %751 = vmatpush1.bf16.msra.mxu0 0
        %752 = vmatprep.subr.bf16.mxu0 0
        %753 = vmatpush1.bf16.msra.mxu0 0
        %754 = vmatprep.subr.bf16.mxu0 0
        %755 = vmatpush1.bf16.msra.mxu0 0
        %756 = vmatprep.subr.bf16.mxu0 0
        %757 = vmatpush1.bf16.msra.mxu0 0
        %758 = vmatprep.subr.bf16.mxu0 0
        %759 = vmatpush1.bf16.msra.mxu0 0
        %760 = vmatprep.subr.bf16.mxu0 0
        %761 = vmatpush1.bf16.msra.mxu0 0
        %762 = vmatprep.subr.bf16.mxu0 0
        %763 = vmatpush1.bf16.msra.mxu0 0
        %764 = vmatprep.subr.bf16.mxu0 0
        %765 = vmatpush1.bf16.msra.mxu0 0
        %766 = vmatprep.subr.bf16.mxu0 0
        %767 = vmatpush1.bf16.msra.mxu0 0
        %768 = vmatprep.subr.bf16.mxu0 0
        %769 = vmatpush1.bf16.msra.mxu0 0
        %770 = vmatprep.subr.bf16.mxu0 0
        %771 = vmatpush1.bf16.msra.mxu0 0
        %772 = vmatprep.subr.bf16.mxu0 0
        %773 = vmatpush1.bf16.msra.mxu0 0
        %774 = vmatprep.mubr.bf16.mxu0 0
        %775 = vmatmul.mubr.bf16.gmra.mrb[0].mxu0 %v740
        %v776 = vpop.f32.mrb[0].mxu0
        %v777 = vadd.f32 0.0, %v776
        %v778 = vpop.f32.mrb[0].mxu0
        %v779 = vpop.f32.mrb[0].mxu0
        %v780 = vadd.f32 0.0, %v779
        %v781 = vpop.f32.mrb[0].mxu0
        %782 = vdwg.mxu0
        %v783 = vadd.f32 %v717, %v777
        %v784 = vadd.f32 %v718, %v780
        %785 = vst.msk [vmem:[#allocation4] sm:$0xff] %vm266, %v783
        %786 = vst.msk [vmem:[#allocation4 + $0x8] sm:$0xff] %vm266, %v784
        %v787 = vld [vmem:[#allocation4] sm:$0xff]
        %v788 = vld [vmem:[#allocation4 + $0x8] sm:$0xff]
        %v789 = vld [vmem:[#allocation3 + $0x2] sm:$0xff]
        %v790 = vld [vmem:[#allocation3 + $0xa] sm:$0xff]
        %v791 = vpack.c.bf16 %v790, %v789
        %s792 = scalar_lea.vmem [#allocation7], 32
        %v793 = vld [vmem:[%s792] sm:$0xf]
        %v794 = vld [vmem:[%s792 + $0x4] sm:$0xf]
        %v795 = vld [vmem:[%s792 + $0x8] sm:$0xf]
        %v796 = vld [vmem:[%s792 + $0xc] sm:$0xf]
        %v801 = vunpack.c.l.b16 %v793
        %v802 = vunpack.c.l.b16 %v794
        %v803 = vunpack.c.l.b16 %v795
        %v804 = vunpack.c.l.b16 %v796
        %v805 = vpack.c.b16 %v802, %v801
        %v806 = vpack.c.b16 %v804, %v803
        %v810 = vsel %vm266, %v791, 0
        %812 = vmatprep.subr.bf16.mxu0 0
        %813 = vmatpush1.bf16.msra.mxu0 %v805
        %814 = vmatprep.subr.bf16.mxu0 0
        %815 = vmatpush1.bf16.msra.mxu0 %v806
        %816 = vmatprep.subr.bf16.mxu0 0
        %817 = vmatpush1.bf16.msra.mxu0 0
        %818 = vmatprep.subr.bf16.mxu0 0
        %819 = vmatpush1.bf16.msra.mxu0 0
        %820 = vmatprep.subr.bf16.mxu0 0
        %821 = vmatpush1.bf16.msra.mxu0 0
        %822 = vmatprep.subr.bf16.mxu0 0
        %823 = vmatpush1.bf16.msra.mxu0 0
        %824 = vmatprep.subr.bf16.mxu0 0
        %825 = vmatpush1.bf16.msra.mxu0 0
        %826 = vmatprep.subr.bf16.mxu0 0
        %827 = vmatpush1.bf16.msra.mxu0 0
        %828 = vmatprep.subr.bf16.mxu0 0
        %829 = vmatpush1.bf16.msra.mxu0 0
        %830 = vmatprep.subr.bf16.mxu0 0
        %831 = vmatpush1.bf16.msra.mxu0 0
        %832 = vmatprep.subr.bf16.mxu0 0
        %833 = vmatpush1.bf16.msra.mxu0 0
        %834 = vmatprep.subr.bf16.mxu0 0
        %835 = vmatpush1.bf16.msra.mxu0 0
        %836 = vmatprep.subr.bf16.mxu0 0
        %837 = vmatpush1.bf16.msra.mxu0 0
        %838 = vmatprep.subr.bf16.mxu0 0
        %839 = vmatpush1.bf16.msra.mxu0 0
        %840 = vmatprep.subr.bf16.mxu0 0
        %841 = vmatpush1.bf16.msra.mxu0 0
        %842 = vmatprep.subr.bf16.mxu0 0
        %843 = vmatpush1.bf16.msra.mxu0 0
        %844 = vmatprep.mubr.bf16.mxu0 0
        %845 = vmatmul.mubr.bf16.gmra.mrb[0].mxu0 %v810
        %v846 = vpop.f32.mrb[0].mxu0
        %v847 = vadd.f32 0.0, %v846
        %v848 = vpop.f32.mrb[0].mxu0
        %v849 = vpop.f32.mrb[0].mxu0
        %v850 = vadd.f32 0.0, %v849
        %v851 = vpop.f32.mrb[0].mxu0
        %852 = vdwg.mxu0
        %v853 = vadd.f32 %v787, %v847
        %v854 = vadd.f32 %v788, %v850
        %855 = vst.msk [vmem:[#allocation4] sm:$0xff] %vm266, %v853
        %856 = vst.msk [vmem:[#allocation4 + $0x8] sm:$0xff] %vm266, %v854
        %v857 = vld [vmem:[#allocation4] sm:$0xff]
        %v858 = vld [vmem:[#allocation4 + $0x8] sm:$0xff]
        %v859 = vld [vmem:[#allocation3 + $0x3] sm:$0xff]
        %v860 = vld [vmem:[#allocation3 + $0xb] sm:$0xff]
        %v861 = vpack.c.bf16 %v860, %v859
        %s862 = scalar_lea.vmem [#allocation7], 48
        %v863 = vld [vmem:[%s862] sm:$0xf]
        %v864 = vld [vmem:[%s862 + $0x4] sm:$0xf]
        %v865 = vld [vmem:[%s862 + $0x8] sm:$0xf]
        %v866 = vld [vmem:[%s862 + $0xc] sm:$0xf]
        %v871 = vunpack.c.l.b16 %v863
        %v872 = vunpack.c.l.b16 %v864
        %v873 = vunpack.c.l.b16 %v865
        %v874 = vunpack.c.l.b16 %v866
        %v875 = vpack.c.b16 %v872, %v871
        %v876 = vpack.c.b16 %v874, %v873
        %v880 = vsel %vm266, %v861, 0
        %882 = vmatprep.subr.bf16.mxu0 0
        %883 = vmatpush1.bf16.msra.mxu0 %v875
        %884 = vmatprep.subr.bf16.mxu0 0
        %885 = vmatpush1.bf16.msra.mxu0 %v876
        %886 = vmatprep.subr.bf16.mxu0 0
        %887 = vmatpush1.bf16.msra.mxu0 0
        %888 = vmatprep.subr.bf16.mxu0 0
        %889 = vmatpush1.bf16.msra.mxu0 0
        %890 = vmatprep.subr.bf16.mxu0 0
        %891 = vmatpush1.bf16.msra.mxu0 0
        %892 = vmatprep.subr.bf16.mxu0 0
        %893 = vmatpush1.bf16.msra.mxu0 0
        %894 = vmatprep.subr.bf16.mxu0 0
        %895 = vmatpush1.bf16.msra.mxu0 0
        %896 = vmatprep.subr.bf16.mxu0 0
        %897 = vmatpush1.bf16.msra.mxu0 0
        %898 = vmatprep.subr.bf16.mxu0 0
        %899 = vmatpush1.bf16.msra.mxu0 0
        %900 = vmatprep.subr.bf16.mxu0 0
        %901 = vmatpush1.bf16.msra.mxu0 0
        %902 = vmatprep.subr.bf16.mxu0 0
        %903 = vmatpush1.bf16.msra.mxu0 0
        %904 = vmatprep.subr.bf16.mxu0 0
        %905 = vmatpush1.bf16.msra.mxu0 0
        %906 = vmatprep.subr.bf16.mxu0 0
        %907 = vmatpush1.bf16.msra.mxu0 0
        %908 = vmatprep.subr.bf16.mxu0 0
        %909 = vmatpush1.bf16.msra.mxu0 0
        %910 = vmatprep.subr.bf16.mxu0 0
        %911 = vmatpush1.bf16.msra.mxu0 0
        %912 = vmatprep.subr.bf16.mxu0 0
        %913 = vmatpush1.bf16.msra.mxu0 0
        %914 = vmatprep.mubr.bf16.mxu0 0
        %915 = vmatmul.mubr.bf16.gmra.mrb[0].mxu0 %v880
        %v916 = vpop.f32.mrb[0].mxu0
        %v917 = vadd.f32 0.0, %v916
        %v918 = vpop.f32.mrb[0].mxu0
        %v919 = vpop.f32.mrb[0].mxu0
        %v920 = vadd.f32 0.0, %v919
        %v921 = vpop.f32.mrb[0].mxu0
        %922 = vdwg.mxu0
        %v923 = vadd.f32 %v857, %v917
        %v924 = vadd.f32 %v858, %v920
        %925 = vst.msk [vmem:[#allocation4] sm:$0xff] %vm266, %v923
        %926 = vst.msk [vmem:[#allocation4 + $0x8] sm:$0xff] %vm266, %v924
        %v927 = vld [vmem:[#allocation4] sm:$0xff]
        %v928 = vld [vmem:[#allocation4 + $0x8] sm:$0xff]
        %v929 = vld [vmem:[#allocation3 + $0x4] sm:$0xff]
        %v930 = vld [vmem:[#allocation3 + $0xc] sm:$0xff]
        %v931 = vpack.c.bf16 %v930, %v929
        %s932 = scalar_lea.vmem [#allocation7], 64
        %v933 = vld [vmem:[%s932] sm:$0xf]
        %v934 = vld [vmem:[%s932 + $0x4] sm:$0xf]
        %v935 = vld [vmem:[%s932 + $0x8] sm:$0xf]
        %v936 = vld [vmem:[%s932 + $0xc] sm:$0xf]
        %v941 = vunpack.c.l.b16 %v933
        %v942 = vunpack.c.l.b16 %v934
        %v943 = vunpack.c.l.b16 %v935
        %v944 = vunpack.c.l.b16 %v936
        %v945 = vpack.c.b16 %v942, %v941
        %v946 = vpack.c.b16 %v944, %v943
        %v950 = vsel %vm266, %v931, 0
        %952 = vmatprep.subr.bf16.mxu0 0
        %953 = vmatpush1.bf16.msra.mxu0 %v945
        %954 = vmatprep.subr.bf16.mxu0 0
        %955 = vmatpush1.bf16.msra.mxu0 %v946
        %956 = vmatprep.subr.bf16.mxu0 0
        %957 = vmatpush1.bf16.msra.mxu0 0
        %958 = vmatprep.subr.bf16.mxu0 0
        %959 = vmatpush1.bf16.msra.mxu0 0
        %960 = vmatprep.subr.bf16.mxu0 0
        %961 = vmatpush1.bf16.msra.mxu0 0
        %962 = vmatprep.subr.bf16.mxu0 0
        %963 = vmatpush1.bf16.msra.mxu0 0
        %964 = vmatprep.subr.bf16.mxu0 0
        %965 = vmatpush1.bf16.msra.mxu0 0
        %966 = vmatprep.subr.bf16.mxu0 0
        %967 = vmatpush1.bf16.msra.mxu0 0
        %968 = vmatprep.subr.bf16.mxu0 0
        %969 = vmatpush1.bf16.msra.mxu0 0
        %970 = vmatprep.subr.bf16.mxu0 0
        %971 = vmatpush1.bf16.msra.mxu0 0
        %972 = vmatprep.subr.bf16.mxu0 0
        %973 = vmatpush1.bf16.msra.mxu0 0
        %974 = vmatprep.subr.bf16.mxu0 0
        %975 = vmatpush1.bf16.msra.mxu0 0
        %976 = vmatprep.subr.bf16.mxu0 0
        %977 = vmatpush1.bf16.msra.mxu0 0
        %978 = vmatprep.subr.bf16.mxu0 0
        %979 = vmatpush1.bf16.msra.mxu0 0
        %980 = vmatprep.subr.bf16.mxu0 0
        %981 = vmatpush1.bf16.msra.mxu0 0
        %982 = vmatprep.subr.bf16.mxu0 0
        %983 = vmatpush1.bf16.msra.mxu0 0
        %984 = vmatprep.mubr.bf16.mxu0 0
        %985 = vmatmul.mubr.bf16.gmra.mrb[0].mxu0 %v950
        %v986 = vpop.f32.mrb[0].mxu0
        %v987 = vadd.f32 0.0, %v986
        %v988 = vpop.f32.mrb[0].mxu0
        %v989 = vpop.f32.mrb[0].mxu0
        %v990 = vadd.f32 0.0, %v989
        %v991 = vpop.f32.mrb[0].mxu0
        %992 = vdwg.mxu0
        %v993 = vadd.f32 %v927, %v987
        %v994 = vadd.f32 %v928, %v990
        %995 = vst.msk [vmem:[#allocation4] sm:$0xff] %vm266, %v993
        %996 = vst.msk [vmem:[#allocation4 + $0x8] sm:$0xff] %vm266, %v994
        %v997 = vld [vmem:[#allocation4] sm:$0xff]
        %v998 = vld [vmem:[#allocation4 + $0x8] sm:$0xff]
        %v999 = vsel %vm266, %v997, 0.0
        %v1000 = vsel %vm266, %v998, 0.0
        %v1001 = vadd.f32 %v999, %v1000
        %v1002 = vrot.slane %v1001, 4
        %v1003 = vadd.f32 %v1001, %v1002
        %v1004 = vrot.slane %v1003, 2
        %v1005 = vadd.f32 %v1003, %v1004
        %v1006 = vrot.slane %v1005, 1
        %v1007 = vadd.f32 %v1005, %v1006
        %v1008 = vmul.f32 %v1007, 0.0625
        %v1009 = vmul.f32 %v997, %v997
        %v1010 = vmul.f32 %v998, %v998
        %v1011 = vsel %vm266, %v1009, 0.0
        %v1012 = vsel %vm266, %v1010, 0.0
        %v1013 = vadd.f32 %v1011, %v1012
        %v1014 = vrot.slane %v1013, 4
        %v1015 = vadd.f32 %v1013, %v1014
        %v1016 = vrot.slane %v1015, 2
        %v1017 = vadd.f32 %v1015, %v1016
        %v1018 = vrot.slane %v1017, 1
        %v1019 = vadd.f32 %v1017, %v1018
        %v1020 = vmul.f32 %v1019, 0.0625
        %v1021 = vmul.f32 %v1008, %v1008
        %v1022 = vsub.f32 %v1020, %v1021
        %v1023 = vsub.f32 %v997, %v1008
        %v1024 = vsub.f32 %v998, %v1008
        %v1025 = vadd.f32 %v1022, 1e-05
        %v1026 = vrsqrt.pop %v1025
        %v1027 = vmul.f32 %v1023, %v1026
        %v1028 = vmul.f32 %v1024, %v1026
        %v1029 = vmax.f32 %v1027, 0.0
        %v1030 = vmax.f32 %v1028, 0.0
        %1031 = vst.msk [vmem:[#allocation3 + $0x2] sm:$0xff] %vm266, %v1029
        %1032 = vst.msk [vmem:[#allocation3 + $0xa] sm:$0xff] %vm266, %v1030
        %v1033 = vld [vmem:[#allocation3] sm:$0xff]
        %v1034 = vld [vmem:[#allocation3 + $0x8] sm:$0xff]
        %v1035 = vpack.c.bf16 %v1034, %v1033
        %v1036 = vld [vmem:[%s3] sm:$0xf]
        %v1037 = vld [vmem:[%s3 + $0x4] sm:$0xf]
        %v1038 = vld [vmem:[%s3 + $0x8] sm:$0xf]
        %v1039 = vld [vmem:[%s3 + $0xc] sm:$0xf]
        %v1040 = vld [vmem:[#allocation3 + $0x1] sm:$0xff]
        %v1041 = vld [vmem:[#allocation3 + $0x9] sm:$0xff]
        %v1042 = vpack.c.bf16 %v1041, %v1040
        %s1043 = scalar_lea.vmem %s3, 16
        %v1044 = vld [vmem:[%s1043] sm:$0xf]
        %v1045 = vld [vmem:[%s1043 + $0x4] sm:$0xf]
        %v1046 = vld [vmem:[%s1043 + $0x8] sm:$0xf]
        %v1047 = vld [vmem:[%s1043 + $0xc] sm:$0xf]
        %v1052 = vunpack.c.l.b16 %v1044
        %v1053 = vunpack.c.l.b16 %v1045
        %v1054 = vunpack.c.l.b16 %v1046
        %v1055 = vunpack.c.l.b16 %v1047
        %v1056 = vpack.c.b16 %v1053, %v1052
        %v1057 = vpack.c.b16 %v1055, %v1054
        %v1061 = vsel %vm266, %v1042, 0
        %1063 = vmatprep.subr.bf16.mxu0 0
        %1064 = vmatpush1.bf16.msra.mxu0 %v1056
        %1065 = vmatprep.subr.bf16.mxu0 0
        %1066 = vmatpush1.bf16.msra.mxu0 %v1057
        %1067 = vmatprep.subr.bf16.mxu0 0
        %1068 = vmatpush1.bf16.msra.mxu0 0
        %1069 = vmatprep.subr.bf16.mxu0 0
        %1070 = vmatpush1.bf16.msra.mxu0 0
        %1071 = vmatprep.subr.bf16.mxu0 0
        %1072 = vmatpush1.bf16.msra.mxu0 0
        %1073 = vmatprep.subr.bf16.mxu0 0
        %1074 = vmatpush1.bf16.msra.mxu0 0
        %1075 = vmatprep.subr.bf16.mxu0 0
        %1076 = vmatpush1.bf16.msra.mxu0 0
        %1077 = vmatprep.subr.bf16.mxu0 0
        %1078 = vmatpush1.bf16.msra.mxu0 0
        %1079 = vmatprep.subr.bf16.mxu0 0
        %1080 = vmatpush1.bf16.msra.mxu0 0
        %1081 = vmatprep.subr.bf16.mxu0 0
        %1082 = vmatpush1.bf16.msra.mxu0 0
        %1083 = vmatprep.subr.bf16.mxu0 0
        %1084 = vmatpush1.bf16.msra.mxu0 0
        %1085 = vmatprep.subr.bf16.mxu0 0
        %1086 = vmatpush1.bf16.msra.mxu0 0
        %1087 = vmatprep.subr.bf16.mxu0 0
        %1088 = vmatpush1.bf16.msra.mxu0 0
        %1089 = vmatprep.subr.bf16.mxu0 0
        %1090 = vmatpush1.bf16.msra.mxu0 0
        %1091 = vmatprep.subr.bf16.mxu0 0
        %1092 = vmatpush1.bf16.msra.mxu0 0
        %1093 = vmatprep.subr.bf16.mxu0 0
        %1094 = vmatpush1.bf16.msra.mxu0 0
        %1095 = vmatprep.mubr.bf16.mxu0 0
        %1096 = vmatmul.mubr.bf16.gmra.mrb[0].mxu0 %v1061
        %v1097 = vpop.f32.mrb[0].mxu0
        %v1098 = vadd.f32 0.0, %v1097
        %v1099 = vpop.f32.mrb[0].mxu0
        %v1100 = vpop.f32.mrb[0].mxu0
        %v1101 = vadd.f32 0.0, %v1100
        %v1102 = vpop.f32.mrb[0].mxu0
        %1103 = vdwg.mxu0
        %v1108 = vunpack.c.l.b16 %v1036
        %v1109 = vunpack.c.l.b16 %v1037
        %v1110 = vunpack.c.l.b16 %v1038
        %v1111 = vunpack.c.l.b16 %v1039
        %v1112 = vpack.c.b16 %v1109, %v1108
        %v1113 = vpack.c.b16 %v1111, %v1110
        %v1117 = vsel %vm266, %v1035, 0
        %1119 = vmatprep.subr.bf16.mxu0 0
        %1120 = vmatpush1.bf16.msra.mxu0 %v1112
        %1121 = vmatprep.subr.bf16.mxu0 0
        %1122 = vmatpush1.bf16.msra.mxu0 %v1113
        %1123 = vmatprep.subr.bf16.mxu0 0
        %1124 = vmatpush1.bf16.msra.mxu0 0
        %1125 = vmatprep.subr.bf16.mxu0 0
        %1126 = vmatpush1.bf16.msra.mxu0 0
        %1127 = vmatprep.subr.bf16.mxu0 0
        %1128 = vmatpush1.bf16.msra.mxu0 0
        %1129 = vmatprep.subr.bf16.mxu0 0
        %1130 = vmatpush1.bf16.msra.mxu0 0
        %1131 = vmatprep.subr.bf16.mxu0 0
        %1132 = vmatpush1.bf16.msra.mxu0 0
        %1133 = vmatprep.subr.bf16.mxu0 0
        %1134 = vmatpush1.bf16.msra.mxu0 0
        %1135 = vmatprep.subr.bf16.mxu0 0
        %1136 = vmatpush1.bf16.msra.mxu0 0
        %1137 = vmatprep.subr.bf16.mxu0 0
        %1138 = vmatpush1.bf16.msra.mxu0 0
        %1139 = vmatprep.subr.bf16.mxu0 0
        %1140 = vmatpush1.bf16.msra.mxu0 0
        %1141 = vmatprep.subr.bf16.mxu0 0
        %1142 = vmatpush1.bf16.msra.mxu0 0
        %1143 = vmatprep.subr.bf16.mxu0 0
        %1144 = vmatpush1.bf16.msra.mxu0 0
        %1145 = vmatprep.subr.bf16.mxu0 0
        %1146 = vmatpush1.bf16.msra.mxu0 0
        %1147 = vmatprep.subr.bf16.mxu0 0
        %1148 = vmatpush1.bf16.msra.mxu0 0
        %1149 = vmatprep.subr.bf16.mxu0 0
        %1150 = vmatpush1.bf16.msra.mxu0 0
        %1151 = vmatprep.mubr.bf16.mxu0 0
        %1152 = vmatmul.mubr.bf16.gmra.mrb[0].mxu0 %v1117
        %v1153 = vpop.f32.mrb[0].mxu0
        %v1154 = vadd.f32 %v1098, %v1153
        %v1155 = vpop.f32.mrb[0].mxu0
        %v1156 = vpop.f32.mrb[0].mxu0
        %v1157 = vadd.f32 %v1101, %v1156
        %v1158 = vpop.f32.mrb[0].mxu0
        %1159 = vdwg.mxu0
        %v1160 = vld [vmem:[#allocation3 + $0x2] sm:$0xff]
        %v1161 = vld [vmem:[#allocation3 + $0xa] sm:$0xff]
        %v1162 = vpack.c.bf16 %v1161, %v1160
        %s1163 = scalar_lea.vmem %s3, 32
        %v1164 = vld [vmem:[%s1163] sm:$0xf]
        %v1165 = vld [vmem:[%s1163 + $0x4] sm:$0xf]
        %v1166 = vld [vmem:[%s1163 + $0x8] sm:$0xf]
        %v1167 = vld [vmem:[%s1163 + $0xc] sm:$0xf]
        %v1172 = vunpack.c.l.b16 %v1164
        %v1173 = vunpack.c.l.b16 %v1165
        %v1174 = vunpack.c.l.b16 %v1166
        %v1175 = vunpack.c.l.b16 %v1167
        %v1176 = vpack.c.b16 %v1173, %v1172
        %v1177 = vpack.c.b16 %v1175, %v1174
        %v1181 = vsel %vm266, %v1162, 0
        %1183 = vmatprep.subr.bf16.mxu0 0
        %1184 = vmatpush1.bf16.msra.mxu0 %v1176
        %1185 = vmatprep.subr.bf16.mxu0 0
        %1186 = vmatpush1.bf16.msra.mxu0 %v1177
        %1187 = vmatprep.subr.bf16.mxu0 0
        %1188 = vmatpush1.bf16.msra.mxu0 0
        %1189 = vmatprep.subr.bf16.mxu0 0
        %1190 = vmatpush1.bf16.msra.mxu0 0
        %1191 = vmatprep.subr.bf16.mxu0 0
        %1192 = vmatpush1.bf16.msra.mxu0 0
        %1193 = vmatprep.subr.bf16.mxu0 0
        %1194 = vmatpush1.bf16.msra.mxu0 0
        %1195 = vmatprep.subr.bf16.mxu0 0
        %1196 = vmatpush1.bf16.msra.mxu0 0
        %1197 = vmatprep.subr.bf16.mxu0 0
        %1198 = vmatpush1.bf16.msra.mxu0 0
        %1199 = vmatprep.subr.bf16.mxu0 0
        %1200 = vmatpush1.bf16.msra.mxu0 0
        %1201 = vmatprep.subr.bf16.mxu0 0
        %1202 = vmatpush1.bf16.msra.mxu0 0
        %1203 = vmatprep.subr.bf16.mxu0 0
        %1204 = vmatpush1.bf16.msra.mxu0 0
        %1205 = vmatprep.subr.bf16.mxu0 0
        %1206 = vmatpush1.bf16.msra.mxu0 0
        %1207 = vmatprep.subr.bf16.mxu0 0
        %1208 = vmatpush1.bf16.msra.mxu0 0
        %1209 = vmatprep.subr.bf16.mxu0 0
        %1210 = vmatpush1.bf16.msra.mxu0 0
        %1211 = vmatprep.subr.bf16.mxu0 0
        %1212 = vmatpush1.bf16.msra.mxu0 0
        %1213 = vmatprep.subr.bf16.mxu0 0
        %1214 = vmatpush1.bf16.msra.mxu0 0
        %1215 = vmatprep.mubr.bf16.mxu0 0
        %1216 = vmatmul.mubr.bf16.gmra.mrb[0].mxu0 %v1181
        %v1217 = vpop.f32.mrb[0].mxu0
        %v1218 = vadd.f32 0.0, %v1217
        %v1219 = vpop.f32.mrb[0].mxu0
        %v1220 = vpop.f32.mrb[0].mxu0
        %v1221 = vadd.f32 0.0, %v1220
        %v1222 = vpop.f32.mrb[0].mxu0
        %1223 = vdwg.mxu0
        %v1224 = vadd.f32 %v1154, %v1218
        %v1225 = vadd.f32 %v1157, %v1221
        %v1226 = vld [vmem:[#allocation3 + $0x3] sm:$0xff]
        %v1227 = vld [vmem:[#allocation3 + $0xb] sm:$0xff]
        %v1228 = vpack.c.bf16 %v1227, %v1226
        %s1229 = scalar_lea.vmem %s3, 48
        %v1230 = vld [vmem:[%s1229] sm:$0xf]
        %v1231 = vld [vmem:[%s1229 + $0x4] sm:$0xf]
        %v1232 = vld [vmem:[%s1229 + $0x8] sm:$0xf]
        %v1233 = vld [vmem:[%s1229 + $0xc] sm:$0xf]
        %v1238 = vunpack.c.l.b16 %v1230
        %v1239 = vunpack.c.l.b16 %v1231
        %v1240 = vunpack.c.l.b16 %v1232
        %v1241 = vunpack.c.l.b16 %v1233
        %v1242 = vpack.c.b16 %v1239, %v1238
        %v1243 = vpack.c.b16 %v1241, %v1240
        %v1247 = vsel %vm266, %v1228, 0
        %1249 = vmatprep.subr.bf16.mxu0 0
        %1250 = vmatpush1.bf16.msra.mxu0 %v1242
        %1251 = vmatprep.subr.bf16.mxu0 0
        %1252 = vmatpush1.bf16.msra.mxu0 %v1243
        %1253 = vmatprep.subr.bf16.mxu0 0
        %1254 = vmatpush1.bf16.msra.mxu0 0
        %1255 = vmatprep.subr.bf16.mxu0 0
        %1256 = vmatpush1.bf16.msra.mxu0 0
        %1257 = vmatprep.subr.bf16.mxu0 0
        %1258 = vmatpush1.bf16.msra.mxu0 0
        %1259 = vmatprep.subr.bf16.mxu0 0
        %1260 = vmatpush1.bf16.msra.mxu0 0
        %1261 = vmatprep.subr.bf16.mxu0 0
        %1262 = vmatpush1.bf16.msra.mxu0 0
        %1263 = vmatprep.subr.bf16.mxu0 0
        %1264 = vmatpush1.bf16.msra.mxu0 0
        %1265 = vmatprep.subr.bf16.mxu0 0
        %1266 = vmatpush1.bf16.msra.mxu0 0
        %1267 = vmatprep.subr.bf16.mxu0 0
        %1268 = vmatpush1.bf16.msra.mxu0 0
        %1269 = vmatprep.subr.bf16.mxu0 0
        %1270 = vmatpush1.bf16.msra.mxu0 0
        %1271 = vmatprep.subr.bf16.mxu0 0
        %1272 = vmatpush1.bf16.msra.mxu0 0
        %1273 = vmatprep.subr.bf16.mxu0 0
        %1274 = vmatpush1.bf16.msra.mxu0 0
        %1275 = vmatprep.subr.bf16.mxu0 0
        %1276 = vmatpush1.bf16.msra.mxu0 0
        %1277 = vmatprep.subr.bf16.mxu0 0
        %1278 = vmatpush1.bf16.msra.mxu0 0
        %1279 = vmatprep.subr.bf16.mxu0 0
        %1280 = vmatpush1.bf16.msra.mxu0 0
        %1281 = vmatprep.mubr.bf16.mxu0 0
        %1282 = vmatmul.mubr.bf16.gmra.mrb[0].mxu0 %v1247
        %v1283 = vpop.f32.mrb[0].mxu0
        %v1284 = vadd.f32 0.0, %v1283
        %v1285 = vpop.f32.mrb[0].mxu0
        %v1286 = vpop.f32.mrb[0].mxu0
        %v1287 = vadd.f32 0.0, %v1286
        %v1288 = vpop.f32.mrb[0].mxu0
        %1289 = vdwg.mxu0
        %v1290 = vadd.f32 %v1224, %v1284
        %v1291 = vadd.f32 %v1225, %v1287
        %v1292 = vld [vmem:[#allocation3 + $0x4] sm:$0xff]
        %v1293 = vld [vmem:[#allocation3 + $0xc] sm:$0xff]
        %v1294 = vpack.c.bf16 %v1293, %v1292
        %s1295 = scalar_lea.vmem %s3, 64
        %v1296 = vld [vmem:[%s1295] sm:$0xf]
        %v1297 = vld [vmem:[%s1295 + $0x4] sm:$0xf]
        %v1298 = vld [vmem:[%s1295 + $0x8] sm:$0xf]
        %v1299 = vld [vmem:[%s1295 + $0xc] sm:$0xf]
        %v1304 = vunpack.c.l.b16 %v1296
        %v1305 = vunpack.c.l.b16 %v1297
        %v1306 = vunpack.c.l.b16 %v1298
        %v1307 = vunpack.c.l.b16 %v1299
        %v1308 = vpack.c.b16 %v1305, %v1304
        %v1309 = vpack.c.b16 %v1307, %v1306
        %v1313 = vsel %vm266, %v1294, 0
        %1315 = vmatprep.subr.bf16.mxu0 0
        %1316 = vmatpush1.bf16.msra.mxu0 %v1308
        %1317 = vmatprep.subr.bf16.mxu0 0
        %1318 = vmatpush1.bf16.msra.mxu0 %v1309
        %1319 = vmatprep.subr.bf16.mxu0 0
        %1320 = vmatpush1.bf16.msra.mxu0 0
        %1321 = vmatprep.subr.bf16.mxu0 0
        %1322 = vmatpush1.bf16.msra.mxu0 0
        %1323 = vmatprep.subr.bf16.mxu0 0
        %1324 = vmatpush1.bf16.msra.mxu0 0
        %1325 = vmatprep.subr.bf16.mxu0 0
        %1326 = vmatpush1.bf16.msra.mxu0 0
        %1327 = vmatprep.subr.bf16.mxu0 0
        %1328 = vmatpush1.bf16.msra.mxu0 0
        %1329 = vmatprep.subr.bf16.mxu0 0
        %1330 = vmatpush1.bf16.msra.mxu0 0
        %1331 = vmatprep.subr.bf16.mxu0 0
        %1332 = vmatpush1.bf16.msra.mxu0 0
        %1333 = vmatprep.subr.bf16.mxu0 0
        %1334 = vmatpush1.bf16.msra.mxu0 0
        %1335 = vmatprep.subr.bf16.mxu0 0
        %1336 = vmatpush1.bf16.msra.mxu0 0
        %1337 = vmatprep.subr.bf16.mxu0 0
        %1338 = vmatpush1.bf16.msra.mxu0 0
        %1339 = vmatprep.subr.bf16.mxu0 0
        %1340 = vmatpush1.bf16.msra.mxu0 0
        %1341 = vmatprep.subr.bf16.mxu0 0
        %1342 = vmatpush1.bf16.msra.mxu0 0
        %1343 = vmatprep.subr.bf16.mxu0 0
        %1344 = vmatpush1.bf16.msra.mxu0 0
        %1345 = vmatprep.subr.bf16.mxu0 0
        %1346 = vmatpush1.bf16.msra.mxu0 0
        %1347 = vmatprep.mubr.bf16.mxu0 0
        %1348 = vmatmul.mubr.bf16.gmra.mrb[0].mxu0 %v1313
        %v1349 = vpop.f32.mrb[0].mxu0
        %v1350 = vadd.f32 0.0, %v1349
        %v1351 = vpop.f32.mrb[0].mxu0
        %v1352 = vpop.f32.mrb[0].mxu0
        %v1353 = vadd.f32 0.0, %v1352
        %v1354 = vpop.f32.mrb[0].mxu0
        %1355 = vdwg.mxu0
        %v1356 = vadd.f32 %v1290, %v1350
        %v1357 = vadd.f32 %v1291, %v1353
        %v1358 = vld [vmem:[%s4] sm:$0x1]
        %v1360 = vlaneseq
        %v1361 = vshrl.u32 %v1360, 7
        %v1362 = vsub.s32 0, %v1361
        %v1363 = vrot.slane %v1358, %v1362
        %v1365 = vadd.f32 %v1356, %v1363
        %v1366 = vadd.f32 %v1357, %v1363
        %vm1367 = vcmask 7168
        %1368 = vst.msk [vmem:[%s259] sm:$0xff] %vm1367, %v1365
        %1369 = vst.msk [vmem:[%s259 + $0x8] sm:$0xff] %vm1367, %v1366
        %v1370 = vxor.u32 %v1365, 2147483648
        %v1371 = vxor.u32 %v1366, 2147483648
        %v1372 = vmul.f32 %v1370, 1.442695
        %v1373 = vpow.pop %v1372
        %v1374 = vmul.f32 %v1371, 1.442695
        %v1375 = vpow.pop %v1374
        %v1376 = vadd.f32 %v1373, 1.0
        %v1377 = vadd.f32 %v1375, 1.0
        %v1378 = vrcp.pop %v1376
        %v1379 = vmul.f32 1.0, %v1378
        %v1380 = vrcp.pop %v1377
        %v1381 = vmul.f32 1.0, %v1380
        %vm1382 = vcmask 15368
        %1383 = vst.msk [vmem:[%s259] sm:$0xff] %vm1382, %v1379
        %1384 = vst.msk [vmem:[%s259 + $0x8] sm:$0xff] %vm1382, %v1381
        %p1385 = scmp.lt.s32.totalorder %s20, 1
        %s1386 = scalar_select %p1385, %s20, 1
        %s1387 = smul.addr %s1386, 2
        %s1388 = smul.addr %s1387, 8
        %s1389 = scalar_lea.vmem %s5, %s1388
        // Predicated region
        $region49: #{tpu_custom_call.1} parent=39 // pred_check
          %p1390 = pneg %p148
        $region50: #{tpu_custom_call.1} parent=39 // pred_check_branch
          %1392 = sbr.rel (%p1390) target = $region52
        $region51: #{tpu_custom_call.1} parent=39 // pred_region
          _
        $region52: #{tpu_custom_call.1} parent=39 // pred_fallthru
          _
      $region40: #{tpu_custom_call.1} parent=5 // pred_fallthru
        _
      %p1393 = scmp.le.s32.totalorder 2, %s15
      // Predicated region
      $region53: #{tpu_custom_call.1} parent=5 // pred_check
        %p1394 = pneg %p1393
      $region54: #{tpu_custom_call.1} parent=5 // pred_check_branch
        %1396 = sbr.rel (%p1394) target = $region56
      $region55: #{tpu_custom_call.1} parent=5 // pred_region
        %s1397 = ssub.s32 %s15, 2
        // Predicated region
        $region57: #{tpu_custom_call.1} parent=55 // pred_check
          %p1398 = pneg %p154
        $region58: #{tpu_custom_call.1} parent=55 // pred_check_branch
          %1400 = sbr.rel (%p1398) target = $region60
        $region59: #{tpu_custom_call.1} parent=55 // pred_region
          %p1401 = scmp.lt.s32.totalorder %s21, 1
          %s1402 = scalar_select %p1401, %s21, 1
          %s1403 = smul.addr %s1402, 2
          %s1404 = smul.addr %s1403, 8
          %s1405 = scalar_lea.vmem %s5, %s1404
        $region60: #{tpu_custom_call.1} parent=55 // pred_fallthru
          _
      $region56: #{tpu_custom_call.1} parent=5 // pred_fallthru
        _
    $region6: #{tpu_custom_call.1} parent=1 // loop_footer
      %s19 = sadd.s32 1, %s15
    $region7: #{tpu_custom_call.1} parent=1 // loop_footer_branch
      %14 = sbr.rel target = $region3
    $region8: #{tpu_custom_call.1} parent=1 // loop_exit
      _
    %1406 = vsyncpa [#allocation6], 1
    %s1407 = scalar_lea.sflag [#allocation6], 1
    %1408 = vsyncpa %s1407, 1
    %1409 = vsyncpa [#allocation8], 1

</llo_original>
